<compile_context>
chip_gen: v7x
topology: tpu7x:2x2x1
jax: 0.10.0
libtpu: 0.0.40
codegen_flags: <defaults>
</compile_context>

<pallas_src>
import functools

import jax
import jax.numpy as jnp
from jax.experimental import pallas as pl
from jax.experimental.pallas import tpu as pltpu

LANE = 128
BN_EPS = 1e-5
TILE_CANDS = (2048, 1024, 512, 256, 128)   # row / reduction tile candidates
FUSED_MAX_NODES = 1024                     # small-graph single-kernel fast path
FUSED_MAX_FEAT = 512


def _round_up(x, m):
    return (x + m - 1) // m * m


def _vmem_limit_bytes():
    """Per-generation scoped-VMEM budget (~3/4 of physical VMEM)."""
    try:
        cap = int(pltpu.get_tpu_info().vmem_capacity_bytes)
    except Exception:
        cap = 64 * 1024 * 1024             # conservative (v7x-sized) fallback
    cap = min(max(cap, 32 * 1024 * 1024), 128 * 1024 * 1024)
    return max(32 * 1024 * 1024, (cap * 3) // 4)   # ~48 MiB v7x, ~96 MiB v5e/v6e


def plan_padding(num_nodes):
    """Node-dim padding for A_hat: multiple of 128 (small) or 512 (large)."""
    n_lane = _round_up(num_nodes, LANE)
    if n_lane <= FUSED_MAX_NODES:
        return n_lane
    return _round_up(num_nodes, 512)


def _layer_vmem_bytes(tile_m, tile_k, f_in, f_out, n_pad, h_resident):
    a_buf = 2 * tile_m * tile_k * 2                         # double-buffered A (bf16)
    h_buf = (2 * n_pad * f_in * 2) if h_resident else (2 * tile_k * f_in * 2)
    acc = tile_m * f_in * 4                                  # f32 accumulator
    z_buf = 2 * tile_m * f_out * 2
    const = 2 * (f_in * f_out * 4 + 4 * f_in * 4 + f_out * 4)
    return a_buf + h_buf + acc + z_buf + const + (2 << 20)


def _plan_tiles(n_pad, f_in, f_out, vmem_limit):
    """Pick (tile_m, tile_k, h_resident) against the per-gen VMEM budget."""
    budget = int(vmem_limit * 0.7)
    cands = [t for t in TILE_CANDS if n_pad % t == 0] or [LANE]
    h_resident = (2 * n_pad * f_in * 2) <= min(budget // 3, 8 << 20)
    # keep >=2 row tiles so the 'parallel' axis can shard across TensorCores
    tile_m_cap = n_pad // 2 if n_pad >= 2 * LANE else n_pad
    for tk in cands:                       # prefer the biggest reduction tile
        for tm in cands:                   # then the biggest row tile
            if tm > tile_m_cap:
                continue
            if _layer_vmem_bytes(tm, tk, f_in, f_out, n_pad, h_resident) <= budget:
                return tm, tk, h_resident
    return cands[-1], cands[-1], False


# ----------------------------- Pallas kernels --------------------------------
def gcn_layer_kernel(a_ref, h_ref, scale_ref, shift_ref, w_ref, b_ref,
                     z_ref, stats_ref, acc_ref,
                     *, apply_input_act, tile_m, tile_k, n_real, h_resident):
    """Z = (A_hat @ act(H)) @ W + b plus masked per-row-tile BN partial stats.

    grid = (row tiles i [parallel], reduction tiles k [arbitrary]).
    act(H) = relu(H*scale + shift) (previous layer's BatchNorm+ReLU) or identity.
    """
    i = pl.program_id(0)
    k = pl.program_id(1)

    @pl.when(k == 0)
    def _():
        acc_ref[...] = jnp.zeros_like(acc_ref)

    if h_resident:
        # H is fully VMEM-resident (constant index_map); slice the k-th chunk.
        off = pl.multiple_of(k * tile_k, tile_k)
        h = h_ref[pl.ds(off, tile_k), :]
    else:
        h = h_ref[...]
    if apply_input_act:
        h = jnp.maximum(h.astype(jnp.float32) * scale_ref[...] + shift_ref[...], 0.0)
        h = h.astype(jnp.bfloat16)
    # else: bf16 straight into the MXU (no f32 cast round trip)

    # Aggregate-first: acc += A_tile @ H_tile  (bf16 x bf16 -> f32 on MXU).
    acc_ref[...] += jnp.dot(a_ref[...], h, preferred_element_type=jnp.float32)

    @pl.when(k == pl.num_programs(1) - 1)
    def _():
        z = jnp.dot(acc_ref[...], w_ref[...],
                    preferred_element_type=jnp.float32) + b_ref[...]
        # Masked one-pass BN partial stats over *real* node rows only.
        row = i * tile_m + jax.lax.broadcasted_iota(jnp.int32, (tile_m, 1), 0)
        zm = z * (row < n_real).astype(jnp.float32)
        s = jnp.sum(zm, axis=0, keepdims=True)
        sq = jnp.sum(zm * zm, axis=0, keepdims=True)
        stats_ref[...] = jnp.concatenate([s, sq], axis=0)[None, :, :]
        z_ref[...] = z.astype(z_ref.dtype)                 # bf16 pre-activation


def head_kernel(z_ref, scale_ref, shift_ref, w_ref, b_ref, out_ref):
    """Final BatchNorm + ReLU fused with the Linear(emb_dim, out) head."""
    h = jnp.maximum(z_ref[...].astype(jnp.float32) * scale_ref[...]
                    + shift_ref[...], 0.0)
    out_ref[...] = jnp.dot(h, w_ref[...],
                           preferred_element_type=jnp.float32) + b_ref[...]


def fused_small_kernel(a_ref, x_ref, w1_ref, b1_ref, g1_ref, be1_ref,
                       w2_ref, b2_ref, g2_ref, be2_ref, wm_ref, bm_ref,
                       out_ref, *, n_real):
    """Whole forward in one kernel: everything fits VMEM for small graphs."""
    n_pad = a_ref.shape[0]
    a = a_ref[...]
    mask = (jax.lax.broadcasted_iota(jnp.int32, (n_pad, 1), 0)
            < n_real).astype(jnp.float32)
    inv_n = 1.0 / float(n_real)

    def bn_relu(z, g, be):
        # training-mode BatchNorm1d over real rows (two-pass, biased var) + ReLU
        mean = jnp.sum(z * mask, axis=0, keepdims=True) * inv_n
        d = (z - mean) * mask
        var = jnp.sum(d * d, axis=0, keepdims=True) * inv_n
        scale = g * jax.lax.rsqrt(var + BN_EPS)   # padded gamma==0 -> cols stay 0
        shift = be - mean * scale
        return jnp.maximum(z * scale + shift, 0.0)

    # Layer 1: aggregate-first  (A @ X) @ W1 + b1
    ax = jnp.dot(a, x_ref[...], preferred_element_type=jnp.float32)
    z1 = jnp.dot(ax, w1_ref[...], preferred_element_type=jnp.float32) + b1_ref[...]
    h1 = bn_relu(z1, g1_ref[...], be1_ref[...])
    # Layer 2
    ah = jnp.dot(a, h1.astype(jnp.bfloat16), preferred_element_type=jnp.float32)
    z2 = jnp.dot(ah, w2_ref[...], preferred_element_type=jnp.float32) + b2_ref[...]
    h2 = bn_relu(z2, g2_ref[...], be2_ref[...])
    # Head (Dropout p=0 == identity; mlp_layer=1 => plain Linear, no act)
    out_ref[...] = jnp.dot(h2, wm_ref[...],
                           preferred_element_type=jnp.float32) + bm_ref[...]


# ------------------------------ JAX wrappers ----------------------------------
def build_normalized_adjacency(edge_index, num_nodes, n_pad):
    """Dense A_hat (PyG gcn_norm, add_remaining_self_loops), zero-padded, bf16.

    Graph-static: build once per graph (n_pad = plan_padding(num_nodes)) and
    reuse across forwards.
    """
    src = edge_index[0]
    dst = edge_index[1]
    # add_remaining_self_loops: keep existing self-loop edges as-is; only add a
    # weight-1 loop for nodes that do not already have one (no double counting).
    is_loop = (src == dst).astype(jnp.float32)
    has_loop = jnp.zeros((num_nodes,), jnp.float32).at[dst].add(is_loop) > 0
    loop_idx = jnp.arange(num_nodes, dtype=src.dtype)
    loop_w = jnp.where(has_loop, 0.0, 1.0)
    src_all = jnp.concatenate([src, loop_idx])
    dst_all = jnp.concatenate([dst, loop_idx])
    w_all = jnp.concatenate([jnp.ones(src.shape[0], jnp.float32), loop_w])
    deg = jnp.zeros((num_nodes,), jnp.float32).at[dst_all].add(w_all)
    dinv = jnp.where(deg > 0, jax.lax.rsqrt(deg), 0.0)
    norm = dinv[src_all] * w_all * dinv[dst_all]
    a = jnp.zeros((n_pad, n_pad), jnp.float32).at[dst_all, src_all].add(norm)
    return a.astype(jnp.bfloat16)


def _pad_mat(w, rows, cols):
    return jnp.zeros((rows, cols), jnp.float32).at[:w.shape[0], :w.shape[1]].set(w)


def _pad_row(v, cols):
    return jnp.zeros((1, cols), jnp.float32).at[0, :v.shape[0]].set(v)


def _gcn_layer(a_hat, h_in, scale_in, shift_in, w, b, *, apply_input_act,
               tile_m, tile_k, n_pad, n_real, f_in, f_out, h_resident,
               vmem_limit):
    num_i = n_pad // tile_m
    num_k = n_pad // tile_k
    kernel = functools.partial(gcn_layer_kernel,
                               apply_input_act=apply_input_act,
                               tile_m=tile_m, tile_k=tile_k, n_real=n_real,
                               h_resident=h_resident)
    if h_resident:
        h_spec = pl.BlockSpec((n_pad, f_in), lambda i, k: (0, 0))     # resident H
    else:
        h_spec = pl.BlockSpec((tile_k, f_in), lambda i, k: (k, 0))    # streamed H
    return pl.pallas_call(
        kernel,
        out_shape=(jax.ShapeDtypeStruct((n_pad, f_out), jnp.bfloat16),
                   jax.ShapeDtypeStruct((num_i, 2, f_out), jnp.float32)),
        grid=(num_i, num_k),
        in_specs=[
            pl.BlockSpec((tile_m, tile_k), lambda i, k: (i, k)),      # A_hat tile
            h_spec,                                                   # H
            pl.BlockSpec((1, f_in), lambda i, k: (0, 0)),             # BN scale (prev)
            pl.BlockSpec((1, f_in), lambda i, k: (0, 0)),             # BN shift (prev)
            pl.BlockSpec((f_in, f_out), lambda i, k: (0, 0)),         # W
            pl.BlockSpec((1, f_out), lambda i, k: (0, 0)),            # b
        ],
        out_specs=(
            pl.BlockSpec((tile_m, f_out), lambda i, k: (i, 0)),       # Z (pre-BN)
            pl.BlockSpec((1, 2, f_out), lambda i, k: (i, 0, 0)),      # (sum, sumsq)
        ),
        scratch_shapes=[pltpu.VMEM((tile_m, f_in), jnp.float32)],
        compiler_params=pltpu.CompilerParams(
            dimension_semantics=("parallel", "arbitrary"),
            vmem_limit_bytes=vmem_limit),
    )(a_hat, h_in, scale_in, shift_in, w, b)


def _bn_scale_shift(stats, n_real, gamma_pad, beta_pad, eps=BN_EPS):
    """Tiny cross-row-tile reduction of per-tile (sum, sumsq) -> scale/shift."""
    s = jnp.sum(stats[:, 0, :], axis=0)
    sq = jnp.sum(stats[:, 1, :], axis=0)
    mean = s / n_real
    var = jnp.maximum(sq / n_real - mean * mean, 0.0)   # biased var (training mode)
    scale = gamma_pad[0] * jax.lax.rsqrt(var + eps)     # padded gamma==0 -> cols stay 0
    shift = beta_pad[0] - mean * scale
    return scale[None, :], shift[None, :]


def _head(z, scale, shift, w, b, *, tile_m, n_pad, f_in, f_out, vmem_limit):
    num_i = n_pad // tile_m
    return pl.pallas_call(
        head_kernel,
        out_shape=jax.ShapeDtypeStruct((n_pad, f_out), jnp.float32),
        grid=(num_i,),
        in_specs=[
            pl.BlockSpec((tile_m, f_in), lambda i: (i, 0)),
            pl.BlockSpec((1, f_in), lambda i: (0, 0)),
            pl.BlockSpec((1, f_in), lambda i: (0, 0)),
            pl.BlockSpec((f_in, f_out), lambda i: (0, 0)),
            pl.BlockSpec((1, f_out), lambda i: (0, 0)),
        ],
        out_specs=pl.BlockSpec((tile_m, f_out), lambda i: (i, 0)),
        compiler_params=pltpu.CompilerParams(
            dimension_semantics=("parallel",),
            vmem_limit_bytes=vmem_limit),
    )(z, scale, shift, w, b)


def gnn_forward(x, a_hat, params):
    n_real, in_dim = x.shape
    emb_dim = params["w1"].shape[1]
    out_dim = params["wm"].shape[1]
    n_pad = a_hat.shape[0]
    assert a_hat.shape == (n_pad, n_pad) and n_pad % LANE == 0 and n_pad >= n_real

    in_p = _round_up(in_dim, LANE)
    emb_p = _round_up(emb_dim, LANE)
    out_p = _round_up(out_dim, LANE)

    # Lane-padded inputs / parameters (padded gamma columns are 0 so padded
    # feature lanes stay exactly zero through every layer).
    xp = jnp.zeros((n_pad, in_p), jnp.bfloat16).at[:n_real, :in_dim].set(
        x.astype(jnp.bfloat16))
    w1 = _pad_mat(params["w1"], in_p, emb_p)
    b1 = _pad_row(params["b1"], emb_p)
    g1 = _pad_row(params["g1"], emb_p)
    be1 = _pad_row(params["be1"], emb_p)
    w2 = _pad_mat(params["w2"], emb_p, emb_p)
    b2 = _pad_row(params["b2"], emb_p)
    g2 = _pad_row(params["g2"], emb_p)
    be2 = _pad_row(params["be2"], emb_p)
    wm = _pad_mat(params["wm"], emb_p, out_p)
    bm = _pad_row(params["bm"], out_p)

    vmem_limit = _vmem_limit_bytes()

    # ---- small-graph fast path: one fused pallas_call, everything VMEM-resident
    f_max = max(in_p, emb_p, out_p)
    fused_bytes = (2 * n_pad * n_pad + 2 * n_pad * in_p + 10 * 4 * n_pad * f_max
                   + 4 * (in_p * emb_p + emb_p * emb_p + emb_p * out_p))
    if (n_pad <= FUSED_MAX_NODES and f_max <= FUSED_MAX_FEAT
            and fused_bytes <= int(vmem_limit * 0.7)):
        out = pl.pallas_call(
            functools.partial(fused_small_kernel, n_real=n_real),
            out_shape=jax.ShapeDtypeStruct((n_pad, out_p), jnp.float32),
            compiler_params=pltpu.CompilerParams(vmem_limit_bytes=vmem_limit),
        )(a_hat, xp, w1, b1, g1, be1, w2, b2, g2, be2, wm, bm)
        return out[:n_real, :out_dim]

    # ---- tiled path (large graphs)
    ident_scale = jnp.ones((1, in_p), jnp.float32)
    ident_shift = jnp.zeros((1, in_p), jnp.float32)

    # Layer 1: Z1 = (A_hat @ X) @ W1 + b1   (aggregate-first: inner width = in_dim)
    tm1, tk1, res1 = _plan_tiles(n_pad, in_p, emb_p, vmem_limit)
    z1, st1 = _gcn_layer(a_hat, xp, ident_scale, ident_shift, w1, b1,
                         apply_input_act=False, tile_m=tm1, tile_k=tk1,
                         n_pad=n_pad, n_real=n_real, f_in=in_p, f_out=emb_p,
                         h_resident=res1, vmem_limit=vmem_limit)
    scale1, shift1 = _bn_scale_shift(st1, n_real, g1, be1)

    # Layer 2: Z2 = (A_hat @ relu(bn1(Z1))) @ W2 + b2  (bn1+relu fused into load)
    tm2, tk2, res2 = _plan_tiles(n_pad, emb_p, emb_p, vmem_limit)
    z2, st2 = _gcn_layer(a_hat, z1, scale1, shift1, w2, b2,
                         apply_input_act=True, tile_m=tm2, tile_k=tk2,
                         n_pad=n_pad, n_real=n_real, f_in=emb_p, f_out=emb_p,
                         h_resident=res2, vmem_limit=vmem_limit)
    scale2, shift2 = _bn_scale_shift(st2, n_real, g2, be2)

    # Head: out = relu(bn2(Z2)) @ Wm + bm  (Dropout p=0 == identity)
    out = _head(z2, scale2, shift2, wm, bm, tile_m=tm2, n_pad=n_pad,
                f_in=emb_p, f_out=out_p, vmem_limit=vmem_limit)
    return out[:n_real, :out_dim]


# --------------------------- deterministic params ----------------------------
def xavier_uniform(key, fan_in, fan_out):
    bound = (6.0 / (fan_in + fan_out)) ** 0.5
    return jax.random.uniform(key, (fan_in, fan_out), jnp.float32, -bound, bound)


def init_params(key, in_dim, emb_dim, out_dim=2):
    k1, k2, k3 = jax.random.split(key, 3)
    return {
        "w1": xavier_uniform(k1, in_dim, emb_dim),
        "b1": jnp.zeros((emb_dim,), jnp.float32),
        "g1": jnp.ones((emb_dim,), jnp.float32),
        "be1": jnp.zeros((emb_dim,), jnp.float32),
        "w2": xavier_uniform(k2, emb_dim, emb_dim),
        "b2": jnp.zeros((emb_dim,), jnp.float32),
        "g2": jnp.ones((emb_dim,), jnp.float32),
        "be2": jnp.zeros((emb_dim,), jnp.float32),
        "wm": xavier_uniform(k3, emb_dim, out_dim),
        "bm": jnp.zeros((out_dim,), jnp.float32),
    }


if __name__ == "__main__":
    key = jax.random.PRNGKey(0)
    k_x, k_e, k_p = jax.random.split(key, 3)

    num_nodes = 16
    in_dim = 8
    emb_dim = 32
    num_edges = 40

    x = jax.random.normal(k_x, (num_nodes, in_dim), jnp.float32)
    edge_index = jax.random.randint(k_e, (2, num_edges), 0, num_nodes, jnp.int32)
    params = init_params(k_p, in_dim, emb_dim, out_dim=2)

    # Graph-static adjacency: built once, reused across forwards.
    n_pad = plan_padding(num_nodes)
    a_hat = build_normalized_adjacency(edge_index, num_nodes, n_pad)

    fwd = jax.jit(gnn_forward)
    out = fwd(x, a_hat, params)
    jax.block_until_ready(out)
    assert out.shape == (num_nodes, 2)
    print("KERNEL_OK")
</pallas_src>

<mosaic_0001>
module attributes {stable_mosaic.version = 11 : i64} {
  func.func @fused_small_kernel(%arg0: memref<128x128xbf16, #tpu.memory_space<vmem>>, %arg1: memref<128x128xbf16, #tpu.memory_space<vmem>>, %arg2: memref<128x128xf32, #tpu.memory_space<vmem>>, %arg3: memref<1x128xf32, #tpu.memory_space<vmem>>, %arg4: memref<1x128xf32, #tpu.memory_space<vmem>>, %arg5: memref<1x128xf32, #tpu.memory_space<vmem>>, %arg6: memref<128x128xf32, #tpu.memory_space<vmem>>, %arg7: memref<1x128xf32, #tpu.memory_space<vmem>>, %arg8: memref<1x128xf32, #tpu.memory_space<vmem>>, %arg9: memref<1x128xf32, #tpu.memory_space<vmem>>, %arg10: memref<128x128xf32, #tpu.memory_space<vmem>>, %arg11: memref<1x128xf32, #tpu.memory_space<vmem>>, %arg12: memref<128x128xf32, #tpu.memory_space<vmem>>) attributes {dimension_semantics = [], scalar_prefetch = 0 : i64, scratch_operands = 0 : i64, tpu.core_type = #tpu.core_type<tc>} {
    %c0 = arith.constant 0 : index
    %c0_0 = arith.constant 0 : index
    %0 = vector.load %arg0[%c0, %c0_0] : memref<128x128xbf16, #tpu.memory_space<vmem>>, vector<128x128xbf16>
    %1 = tpu.iota {dimensions = array<i32: 0>} : vector<128x1xi32>
    %c16_i32 = arith.constant 16 : i32
    %2 = vector.broadcast %c16_i32 : i32 to vector<128x1xi32>
    %3 = arith.cmpi slt, %1, %2 : vector<128x1xi32>
    %4 = arith.extui %3 : vector<128x1xi1> to vector<128x1xi32>
    %5 = arith.sitofp %4 : vector<128x1xi32> to vector<128x1xf32>
    %c0_1 = arith.constant 0 : index
    %c0_2 = arith.constant 0 : index
    %6 = vector.load %arg1[%c0_1, %c0_2] : memref<128x128xbf16, #tpu.memory_space<vmem>>, vector<128x128xbf16>
    %cst = arith.constant dense<0.000000e+00> : vector<128x128xf32>
    %7 = tpu.matmul %0, %6, %cst {dimension_numbers = #tpu.dot_dimension_numbers<[1], [0], [0], [1], [0, 0, 1, 1], [], []>} : vector<128x128xbf16>, vector<128x128xbf16>, vector<128x128xf32> -> vector<128x128xf32>
    %c0_3 = arith.constant 0 : index
    %c0_4 = arith.constant 0 : index
    %8 = vector.load %arg2[%c0_3, %c0_4] : memref<128x128xf32, #tpu.memory_space<vmem>>, vector<128x128xf32>
    %cst_5 = arith.constant dense<0.000000e+00> : vector<128x128xf32>
    %9 = tpu.matmul %7, %8, %cst_5 {dimension_numbers = #tpu.dot_dimension_numbers<[1], [0], [0], [1], [0, 0, 1, 1], [], []>} : vector<128x128xf32>, vector<128x128xf32>, vector<128x128xf32> -> vector<128x128xf32>
    %c0_6 = arith.constant 0 : index
    %c0_7 = arith.constant 0 : index
    %10 = vector.load %arg3[%c0_6, %c0_7] : memref<1x128xf32, #tpu.memory_space<vmem>>, vector<1x128xf32>
    %11 = vector.broadcast %10 : vector<1x128xf32> to vector<128x128xf32>
    %12 = arith.addf %9, %11 : vector<128x128xf32>
    %c0_8 = arith.constant 0 : index
    %c0_9 = arith.constant 0 : index
    %13 = vector.load %arg4[%c0_8, %c0_9] : memref<1x128xf32, #tpu.memory_space<vmem>>, vector<1x128xf32>
    %c0_10 = arith.constant 0 : index
    %c0_11 = arith.constant 0 : index
    %14 = vector.load %arg5[%c0_10, %c0_11] : memref<1x128xf32, #tpu.memory_space<vmem>>, vector<1x128xf32>
    %15 = vector.broadcast %5 : vector<128x1xf32> to vector<128x128xf32>
    %16 = arith.mulf %12, %15 : vector<128x128xf32>
    %cst_12 = arith.constant dense<0.000000e+00> : vector<128xf32>
    %17 = vector.multi_reduction <add>, %16, %cst_12 [0] : vector<128x128xf32> to vector<128xf32>
    %18 = vector.shape_cast %17 : vector<128xf32> to vector<1x128xf32>
    %cst_13 = arith.constant 6.250000e-02 : f32
    %19 = vector.broadcast %cst_13 : f32 to vector<1x128xf32>
    %20 = arith.mulf %18, %19 : vector<1x128xf32>
    %21 = vector.broadcast %20 : vector<1x128xf32> to vector<128x128xf32>
    %22 = arith.subf %12, %21 : vector<128x128xf32>
    %23 = vector.broadcast %5 : vector<128x1xf32> to vector<128x128xf32>
    %24 = arith.mulf %22, %23 : vector<128x128xf32>
    %25 = arith.mulf %24, %24 : vector<128x128xf32>
    %cst_14 = arith.constant dense<0.000000e+00> : vector<128xf32>
    %26 = vector.multi_reduction <add>, %25, %cst_14 [0] : vector<128x128xf32> to vector<128xf32>
    %27 = vector.shape_cast %26 : vector<128xf32> to vector<1x128xf32>
    %cst_15 = arith.constant 6.250000e-02 : f32
    %28 = vector.broadcast %cst_15 : f32 to vector<1x128xf32>
    %29 = arith.mulf %27, %28 : vector<1x128xf32>
    %cst_16 = arith.constant 9.99999974E-6 : f32
    %30 = vector.broadcast %cst_16 : f32 to vector<1x128xf32>
    %31 = arith.addf %29, %30 : vector<1x128xf32>
    %32 = math.rsqrt %31 : vector<1x128xf32>
    %33 = arith.mulf %13, %32 : vector<1x128xf32>
    %34 = arith.mulf %20, %33 : vector<1x128xf32>
    %35 = arith.subf %14, %34 : vector<1x128xf32>
    %36 = vector.broadcast %33 : vector<1x128xf32> to vector<128x128xf32>
    %37 = arith.mulf %12, %36 : vector<128x128xf32>
    %38 = vector.broadcast %35 : vector<1x128xf32> to vector<128x128xf32>
    %39 = arith.addf %37, %38 : vector<128x128xf32>
    %cst_17 = arith.constant 0.000000e+00 : f32
    %40 = vector.broadcast %cst_17 : f32 to vector<128x128xf32>
    %41 = arith.maximumf %39, %40 : vector<128x128xf32>
    %42 = arith.truncf %41 : vector<128x128xf32> to vector<128x128xbf16>
    %cst_18 = arith.constant dense<0.000000e+00> : vector<128x128xf32>
    %43 = tpu.matmul %0, %42, %cst_18 {dimension_numbers = #tpu.dot_dimension_numbers<[1], [0], [0], [1], [0, 0, 1, 1], [], []>} : vector<128x128xbf16>, vector<128x128xbf16>, vector<128x128xf32> -> vector<128x128xf32>
    %c0_19 = arith.constant 0 : index
    %c0_20 = arith.constant 0 : index
    %44 = vector.load %arg6[%c0_19, %c0_20] : memref<128x128xf32, #tpu.memory_space<vmem>>, vector<128x128xf32>
    %cst_21 = arith.constant dense<0.000000e+00> : vector<128x128xf32>
    %45 = tpu.matmul %43, %44, %cst_21 {dimension_numbers = #tpu.dot_dimension_numbers<[1], [0], [0], [1], [0, 0, 1, 1], [], []>} : vector<128x128xf32>, vector<128x128xf32>, vector<128x128xf32> -> vector<128x128xf32>
    %c0_22 = arith.constant 0 : index
    %c0_23 = arith.constant 0 : index
    %46 = vector.load %arg7[%c0_22, %c0_23] : memref<1x128xf32, #tpu.memory_space<vmem>>, vector<1x128xf32>
    %47 = vector.broadcast %46 : vector<1x128xf32> to vector<128x128xf32>
    %48 = arith.addf %45, %47 : vector<128x128xf32>
    %c0_24 = arith.constant 0 : index
    %c0_25 = arith.constant 0 : index
    %49 = vector.load %arg8[%c0_24, %c0_25] : memref<1x128xf32, #tpu.memory_space<vmem>>, vector<1x128xf32>
    %c0_26 = arith.constant 0 : index
    %c0_27 = arith.constant 0 : index
    %50 = vector.load %arg9[%c0_26, %c0_27] : memref<1x128xf32, #tpu.memory_space<vmem>>, vector<1x128xf32>
    %51 = vector.broadcast %5 : vector<128x1xf32> to vector<128x128xf32>
    %52 = arith.mulf %48, %51 : vector<128x128xf32>
    %cst_28 = arith.constant dense<0.000000e+00> : vector<128xf32>
    %53 = vector.multi_reduction <add>, %52, %cst_28 [0] : vector<128x128xf32> to vector<128xf32>
    %54 = vector.shape_cast %53 : vector<128xf32> to vector<1x128xf32>
    %cst_29 = arith.constant 6.250000e-02 : f32
    %55 = vector.broadcast %cst_29 : f32 to vector<1x128xf32>
    %56 = arith.mulf %54, %55 : vector<1x128xf32>
    %57 = vector.broadcast %56 : vector<1x128xf32> to vector<128x128xf32>
    %58 = arith.subf %48, %57 : vector<128x128xf32>
    %59 = vector.broadcast %5 : vector<128x1xf32> to vector<128x128xf32>
    %60 = arith.mulf %58, %59 : vector<128x128xf32>
    %61 = arith.mulf %60, %60 : vector<128x128xf32>
    %cst_30 = arith.constant dense<0.000000e+00> : vector<128xf32>
    %62 = vector.multi_reduction <add>, %61, %cst_30 [0] : vector<128x128xf32> to vector<128xf32>
    %63 = vector.shape_cast %62 : vector<128xf32> to vector<1x128xf32>
    %cst_31 = arith.constant 6.250000e-02 : f32
    %64 = vector.broadcast %cst_31 : f32 to vector<1x128xf32>
    %65 = arith.mulf %63, %64 : vector<1x128xf32>
    %cst_32 = arith.constant 9.99999974E-6 : f32
    %66 = vector.broadcast %cst_32 : f32 to vector<1x128xf32>
    %67 = arith.addf %65, %66 : vector<1x128xf32>
    %68 = math.rsqrt %67 : vector<1x128xf32>
    %69 = arith.mulf %49, %68 : vector<1x128xf32>
    %70 = arith.mulf %56, %69 : vector<1x128xf32>
    %71 = arith.subf %50, %70 : vector<1x128xf32>
    %72 = vector.broadcast %69 : vector<1x128xf32> to vector<128x128xf32>
    %73 = arith.mulf %48, %72 : vector<128x128xf32>
    %74 = vector.broadcast %71 : vector<1x128xf32> to vector<128x128xf32>
    %75 = arith.addf %73, %74 : vector<128x128xf32>
    %cst_33 = arith.constant 0.000000e+00 : f32
    %76 = vector.broadcast %cst_33 : f32 to vector<128x128xf32>
    %77 = arith.maximumf %75, %76 : vector<128x128xf32>
    %c0_34 = arith.constant 0 : index
    %c0_35 = arith.constant 0 : index
    %78 = vector.load %arg10[%c0_34, %c0_35] : memref<128x128xf32, #tpu.memory_space<vmem>>, vector<128x128xf32>
    %cst_36 = arith.constant dense<0.000000e+00> : vector<128x128xf32>
    %79 = tpu.matmul %77, %78, %cst_36 {dimension_numbers = #tpu.dot_dimension_numbers<[1], [0], [0], [1], [0, 0, 1, 1], [], []>} : vector<128x128xf32>, vector<128x128xf32>, vector<128x128xf32> -> vector<128x128xf32>
    %c0_37 = arith.constant 0 : index
    %c0_38 = arith.constant 0 : index
    %80 = vector.load %arg11[%c0_37, %c0_38] : memref<1x128xf32, #tpu.memory_space<vmem>>, vector<1x128xf32>
    %81 = vector.broadcast %80 : vector<1x128xf32> to vector<128x128xf32>
    %82 = arith.addf %79, %81 : vector<128x128xf32>
    %c0_39 = arith.constant 0 : index
    %c0_40 = arith.constant 0 : index
    %83 = vector.load %arg12[%c0_39, %c0_40] : memref<128x128xf32, #tpu.memory_space<vmem>>, vector<128x128xf32>
    tpu.vector_store %arg12[%c0_39, %c0_40], %82 {strides = array<i32>} : memref<128x128xf32, #tpu.memory_space<vmem>>, vector<128x128xf32>,
    return
  }
}

</mosaic_0001>

<llo_original>
// kernel: gnn_forward.1
$region0: #{gnn_forward.1}
  #allocation0 [shape = 'u32[]', space=smem, size = 0x4, offset = 0x4, fixed_abs, tag = 'smem constant byte address 0x4 - core index']
  #allocation1 [shape = 'u32[144,128]{1,0:T(1,128)}', space=vmem, size = 0x12000, scoped, tag = 'internal scratch']
  %s0 = inlined_call_operand.vmem [shape: bf16[128,128], index: 0, kind: input, shape index: {}]
  %s1 = inlined_call_operand.vmem [shape: bf16[128,128], index: 1, kind: input, shape index: {}]
  %s2 = inlined_call_operand.vmem [shape: f32[128,128], index: 2, kind: input, shape index: {}]
  %s3 = inlined_call_operand.vmem [shape: f32[1,128], index: 3, kind: input, shape index: {}]
  %s4 = inlined_call_operand.vmem [shape: f32[1,128], index: 4, kind: input, shape index: {}]
  %s5 = inlined_call_operand.vmem [shape: f32[1,128], index: 5, kind: input, shape index: {}]
  %s6 = inlined_call_operand.vmem [shape: f32[128,128], index: 6, kind: input, shape index: {}]
  %s7 = inlined_call_operand.vmem [shape: f32[1,128], index: 7, kind: input, shape index: {}]
  %s8 = inlined_call_operand.vmem [shape: f32[1,128], index: 8, kind: input, shape index: {}]
  %s9 = inlined_call_operand.vmem [shape: f32[1,128], index: 9, kind: input, shape index: {}]
  %s10 = inlined_call_operand.vmem [shape: f32[128,128], index: 10, kind: input, shape index: {}]
  %s11 = inlined_call_operand.vmem [shape: f32[1,128], index: 11, kind: input, shape index: {}]
  %s12 = inlined_call_operand.vmem [shape: f32[128,128], index: 12, kind: output, shape index: {}]
  %s13 = sld [smem:[#allocation0]]
  $region58: #{gnn_forward.1} parent=0
    _
  %s15 = ssub.s32 1, %s13
  %s16 = scalar_select 0, %s15, %s13
  // Predicated region
  $region2: #{gnn_forward.1} parent=0 // pred_check
    _
  $region3: #{gnn_forward.1} parent=0 // pred_check_branch
    %18 = sbr.rel (0) target = $region5
  $region4: #{gnn_forward.1} parent=0 // pred_region
    _
  $region5: #{gnn_forward.1} parent=0 // pred_fallthru
    _
  // Predicated region
  $region6: #{gnn_forward.1} parent=0 // pred_check
    _
  $region7: #{gnn_forward.1} parent=0 // pred_check_branch
    %20 = sbr.rel (0) target = $region9
  $region8: #{gnn_forward.1} parent=0 // pred_region
    _
  $region9: #{gnn_forward.1} parent=0 // pred_fallthru
    _
  // Predicated region
  $region10: #{gnn_forward.1} parent=0 // pred_check
    _
  $region11: #{gnn_forward.1} parent=0 // pred_check_branch
    %22 = sbr.rel (0) target = $region13
  $region12: #{gnn_forward.1} parent=0 // pred_region
    _
  $region13: #{gnn_forward.1} parent=0 // pred_fallthru
    _
  // Predicated region
  $region14: #{gnn_forward.1} parent=0 // pred_check
    _
  $region15: #{gnn_forward.1} parent=0 // pred_check_branch
    %24 = sbr.rel (0) target = $region17
  $region16: #{gnn_forward.1} parent=0 // pred_region
    _
  $region17: #{gnn_forward.1} parent=0 // pred_fallthru
    _
  // Predicated region
  $region18: #{gnn_forward.1} parent=0 // pred_check
    _
  $region19: #{gnn_forward.1} parent=0 // pred_check_branch
    %26 = sbr.rel (0) target = $region21
  $region20: #{gnn_forward.1} parent=0 // pred_region
    _
  $region21: #{gnn_forward.1} parent=0 // pred_fallthru
    _
  // Predicated region
  $region22: #{gnn_forward.1} parent=0 // pred_check
    _
  $region23: #{gnn_forward.1} parent=0 // pred_check_branch
    %28 = sbr.rel (0) target = $region25
  $region24: #{gnn_forward.1} parent=0 // pred_region
    _
  $region25: #{gnn_forward.1} parent=0 // pred_fallthru
    _
  // Predicated region
  $region26: #{gnn_forward.1} parent=0 // pred_check
    _
  $region27: #{gnn_forward.1} parent=0 // pred_check_branch
    %30 = sbr.rel (0) target = $region29
  $region28: #{gnn_forward.1} parent=0 // pred_region
    _
  $region29: #{gnn_forward.1} parent=0 // pred_fallthru
    _
  // Predicated region
  $region30: #{gnn_forward.1} parent=0 // pred_check
    _
  $region31: #{gnn_forward.1} parent=0 // pred_check_branch
    %32 = sbr.rel (0) target = $region33
  $region32: #{gnn_forward.1} parent=0 // pred_region
    _
  $region33: #{gnn_forward.1} parent=0 // pred_fallthru
    _
  // Predicated region
  $region34: #{gnn_forward.1} parent=0 // pred_check
    _
  $region35: #{gnn_forward.1} parent=0 // pred_check_branch
    %34 = sbr.rel (0) target = $region37
  $region36: #{gnn_forward.1} parent=0 // pred_region
    _
  $region37: #{gnn_forward.1} parent=0 // pred_fallthru
    _
  // Predicated region
  $region38: #{gnn_forward.1} parent=0 // pred_check
    _
  $region39: #{gnn_forward.1} parent=0 // pred_check_branch
    %36 = sbr.rel (0) target = $region41
  $region40: #{gnn_forward.1} parent=0 // pred_region
    _
  $region41: #{gnn_forward.1} parent=0 // pred_fallthru
    _
  // Predicated region
  $region42: #{gnn_forward.1} parent=0 // pred_check
    _
  $region43: #{gnn_forward.1} parent=0 // pred_check_branch
    %38 = sbr.rel (0) target = $region45
  $region44: #{gnn_forward.1} parent=0 // pred_region
    _
  $region45: #{gnn_forward.1} parent=0 // pred_fallthru
    _
  // Predicated region
  $region46: #{gnn_forward.1} parent=0 // pred_check
    _
  $region47: #{gnn_forward.1} parent=0 // pred_check_branch
    %40 = sbr.rel (0) target = $region49
  $region48: #{gnn_forward.1} parent=0 // pred_region
    _
  $region49: #{gnn_forward.1} parent=0 // pred_fallthru
    _
  %v42 = vld [vmem:[%s0] sm:$0xf]
  %v43 = vld [vmem:[%s0 + $0x4] sm:$0xf]
  %v44 = vld [vmem:[%s0 + $0x8] sm:$0xf]
  %v45 = vld [vmem:[%s0 + $0xc] sm:$0xf]
  %v46 = vld [vmem:[%s0 + $0x10] sm:$0xf]
  %v47 = vld [vmem:[%s0 + $0x14] sm:$0xf]
  %v48 = vld [vmem:[%s0 + $0x18] sm:$0xf]
  %v49 = vld [vmem:[%s0 + $0x1c] sm:$0xf]
  %v50 = vld [vmem:[%s0 + $0x20] sm:$0xf]
  %v51 = vld [vmem:[%s0 + $0x24] sm:$0xf]
  %v52 = vld [vmem:[%s0 + $0x28] sm:$0xf]
  %v53 = vld [vmem:[%s0 + $0x2c] sm:$0xf]
  %v54 = vld [vmem:[%s0 + $0x30] sm:$0xf]
  %v55 = vld [vmem:[%s0 + $0x34] sm:$0xf]
  %v56 = vld [vmem:[%s0 + $0x38] sm:$0xf]
  %v57 = vld [vmem:[%s0 + $0x3c] sm:$0xf]
  %v58 = vlaneseq
  %v59 = vshrl.u32 %v58, 7
  %v60 = vadd.s32 %v59, 8
  %v61 = vadd.s32 %v59, 16
  %v62 = vadd.s32 %v59, 24
  %v63 = vadd.s32 %v59, 32
  %v64 = vadd.s32 %v59, 40
  %v65 = vadd.s32 %v59, 48
  %v66 = vadd.s32 %v59, 56
  %v67 = vadd.s32 %v59, 64
  %v68 = vadd.s32 %v59, 72
  %v69 = vadd.s32 %v59, 80
  %v70 = vadd.s32 %v59, 88
  %v71 = vadd.s32 %v59, 96
  %v72 = vadd.s32 %v59, 104
  %v73 = vadd.s32 %v59, 112
  %v74 = vadd.s32 %v59, 120
  %vm75 = vcmp.lt.s32.totalorder %v59, 16
  %vm76 = vcmp.lt.s32.totalorder %v60, 16
  %vm77 = vcmp.lt.s32.totalorder %v61, 16
  %vm78 = vcmp.lt.s32.totalorder %v62, 16
  %vm79 = vcmp.lt.s32.totalorder %v63, 16
  %vm80 = vcmp.lt.s32.totalorder %v64, 16
  %vm81 = vcmp.lt.s32.totalorder %v65, 16
  %vm82 = vcmp.lt.s32.totalorder %v66, 16
  %vm83 = vcmp.lt.s32.totalorder %v67, 16
  %vm84 = vcmp.lt.s32.totalorder %v68, 16
  %vm85 = vcmp.lt.s32.totalorder %v69, 16
  %vm86 = vcmp.lt.s32.totalorder %v70, 16
  %vm87 = vcmp.lt.s32.totalorder %v71, 16
  %vm88 = vcmp.lt.s32.totalorder %v72, 16
  %vm89 = vcmp.lt.s32.totalorder %v73, 16
  %vm90 = vcmp.lt.s32.totalorder %v74, 16
  %v91 = vsel %vm75, 1, 0
  %v92 = vsel %vm76, 1, 0
  %v93 = vsel %vm77, 1, 0
  %v94 = vsel %vm78, 1, 0
  %v95 = vsel %vm79, 1, 0
  %v96 = vsel %vm80, 1, 0
  %v97 = vsel %vm81, 1, 0
  %v98 = vsel %vm82, 1, 0
  %v99 = vsel %vm83, 1, 0
  %v100 = vsel %vm84, 1, 0
  %v101 = vsel %vm85, 1, 0
  %v102 = vsel %vm86, 1, 0
  %v103 = vsel %vm87, 1, 0
  %v104 = vsel %vm88, 1, 0
  %v105 = vsel %vm89, 1, 0
  %v106 = vsel %vm90, 1, 0
  %v107 = vcvt.s32.f32 %v91
  %v108 = vcvt.s32.f32 %v92
  %v109 = vcvt.s32.f32 %v93
  %v110 = vcvt.s32.f32 %v94
  %v111 = vcvt.s32.f32 %v95
  %v112 = vcvt.s32.f32 %v96
  %v113 = vcvt.s32.f32 %v97
  %v114 = vcvt.s32.f32 %v98
  %v115 = vcvt.s32.f32 %v99
  %v116 = vcvt.s32.f32 %v100
  %v117 = vcvt.s32.f32 %v101
  %v118 = vcvt.s32.f32 %v102
  %v119 = vcvt.s32.f32 %v103
  %v120 = vcvt.s32.f32 %v104
  %v121 = vcvt.s32.f32 %v105
  %v122 = vcvt.s32.f32 %v106
  %v123 = vld [vmem:[%s1] sm:$0xf]
  %v124 = vld [vmem:[%s1 + $0x4] sm:$0xf]
  %v125 = vld [vmem:[%s1 + $0x8] sm:$0xf]
  %v126 = vld [vmem:[%s1 + $0xc] sm:$0xf]
  %v127 = vld [vmem:[%s1 + $0x10] sm:$0xf]
  %v128 = vld [vmem:[%s1 + $0x14] sm:$0xf]
  %v129 = vld [vmem:[%s1 + $0x18] sm:$0xf]
  %v130 = vld [vmem:[%s1 + $0x1c] sm:$0xf]
  %v131 = vld [vmem:[%s1 + $0x20] sm:$0xf]
  %v132 = vld [vmem:[%s1 + $0x24] sm:$0xf]
  %v133 = vld [vmem:[%s1 + $0x28] sm:$0xf]
  %v134 = vld [vmem:[%s1 + $0x2c] sm:$0xf]
  %v135 = vld [vmem:[%s1 + $0x30] sm:$0xf]
  %v136 = vld [vmem:[%s1 + $0x34] sm:$0xf]
  %v137 = vld [vmem:[%s1 + $0x38] sm:$0xf]
  %v138 = vld [vmem:[%s1 + $0x3c] sm:$0xf]
  %v155 = vunpack.c.l.b16 %v42
  %v156 = vunpack.c.l.b16 %v43
  %v157 = vunpack.c.l.b16 %v44
  %v158 = vunpack.c.l.b16 %v45
  %v159 = vunpack.c.l.b16 %v46
  %v160 = vunpack.c.l.b16 %v47
  %v161 = vunpack.c.l.b16 %v48
  %v162 = vunpack.c.l.b16 %v49
  %v163 = vunpack.c.l.b16 %v50
  %v164 = vunpack.c.l.b16 %v51
  %v165 = vunpack.c.l.b16 %v52
  %v166 = vunpack.c.l.b16 %v53
  %v167 = vunpack.c.l.b16 %v54
  %v168 = vunpack.c.l.b16 %v55
  %v169 = vunpack.c.l.b16 %v56
  %v170 = vunpack.c.l.b16 %v57
  %v171 = vpack.c.b16 %v156, %v155
  %v172 = vpack.c.b16 %v158, %v157
  %v173 = vpack.c.b16 %v160, %v159
  %v174 = vpack.c.b16 %v162, %v161
  %v175 = vpack.c.b16 %v164, %v163
  %v176 = vpack.c.b16 %v166, %v165
  %v177 = vpack.c.b16 %v168, %v167
  %v178 = vpack.c.b16 %v170, %v169
  %v203 = vunpack.c.l.b16 %v123
  %v204 = vunpack.c.l.b16 %v124
  %v205 = vunpack.c.l.b16 %v125
  %v206 = vunpack.c.l.b16 %v126
  %v207 = vunpack.c.l.b16 %v127
  %v208 = vunpack.c.l.b16 %v128
  %v209 = vunpack.c.l.b16 %v129
  %v210 = vunpack.c.l.b16 %v130
  %v211 = vunpack.c.l.b16 %v131
  %v212 = vunpack.c.l.b16 %v132
  %v213 = vunpack.c.l.b16 %v133
  %v214 = vunpack.c.l.b16 %v134
  %v215 = vunpack.c.l.b16 %v135
  %v216 = vunpack.c.l.b16 %v136
  %v217 = vunpack.c.l.b16 %v137
  %v218 = vunpack.c.l.b16 %v138
  %v219 = vpack.c.b16 %v204, %v203
  %v220 = vpack.c.b16 %v206, %v205
  %v221 = vpack.c.b16 %v208, %v207
  %v222 = vpack.c.b16 %v210, %v209
  %v223 = vpack.c.b16 %v212, %v211
  %v224 = vpack.c.b16 %v214, %v213
  %v225 = vpack.c.b16 %v216, %v215
  %v226 = vpack.c.b16 %v218, %v217
  %235 = vmatprep.subr.bf16.mxu0 0
  %236 = vmatpush1.bf16.msra.mxu0 %v219
  %237 = vmatprep.subr.bf16.mxu0 0
  %238 = vmatpush1.bf16.msra.mxu0 %v220
  %239 = vmatprep.subr.bf16.mxu0 0
  %240 = vmatpush1.bf16.msra.mxu0 %v221
  %241 = vmatprep.subr.bf16.mxu0 0
  %242 = vmatpush1.bf16.msra.mxu0 %v222
  %243 = vmatprep.subr.bf16.mxu0 0
  %244 = vmatpush1.bf16.msra.mxu0 %v223
  %245 = vmatprep.subr.bf16.mxu0 0
  %246 = vmatpush1.bf16.msra.mxu0 %v224
  %247 = vmatprep.subr.bf16.mxu0 0
  %248 = vmatpush1.bf16.msra.mxu0 %v225
  %249 = vmatprep.subr.bf16.mxu0 0
  %250 = vmatpush1.bf16.msra.mxu0 %v226
  %251 = vmatprep.subr.bf16.mxu0 0
  %252 = vmatpush1.bf16.msra.mxu0 0
  %253 = vmatprep.subr.bf16.mxu0 0
  %254 = vmatpush1.bf16.msra.mxu0 0
  %255 = vmatprep.subr.bf16.mxu0 0
  %256 = vmatpush1.bf16.msra.mxu0 0
  %257 = vmatprep.subr.bf16.mxu0 0
  %258 = vmatpush1.bf16.msra.mxu0 0
  %259 = vmatprep.subr.bf16.mxu0 0
  %260 = vmatpush1.bf16.msra.mxu0 0
  %261 = vmatprep.subr.bf16.mxu0 0
  %262 = vmatpush1.bf16.msra.mxu0 0
  %263 = vmatprep.subr.bf16.mxu0 0
  %264 = vmatpush1.bf16.msra.mxu0 0
  %265 = vmatprep.subr.bf16.mxu0 0
  %266 = vmatpush1.bf16.msra.mxu0 0
  %267 = vmatprep.mubr.bf16.mxu0 0
  %268 = vmatmul.mubr.bf16.gmra.mrb[0].mxu0 %v171
  %v269 = vpop.f32.mrb[0].mxu0
  %v270 = vadd.f32 0.0, %v269
  %v271 = vpop.f32.mrb[0].mxu0
  %v272 = vpop.f32.mrb[0].mxu0
  %v273 = vadd.f32 0.0, %v272
  %v274 = vpop.f32.mrb[0].mxu0
  %275 = vmatprep.mubr.bf16.mxu0 0
  %276 = vmatmul.mubr.bf16.gmra.mrb[0].mxu0 %v172
  %v277 = vpop.f32.mrb[0].mxu0
  %v278 = vadd.f32 0.0, %v277
  %v279 = vpop.f32.mrb[0].mxu0
  %v280 = vpop.f32.mrb[0].mxu0
  %v281 = vadd.f32 0.0, %v280
  %v282 = vpop.f32.mrb[0].mxu0
  %283 = vmatprep.mubr.bf16.mxu0 0
  %284 = vmatmul.mubr.bf16.gmra.mrb[0].mxu0 %v173
  %v285 = vpop.f32.mrb[0].mxu0
  %v286 = vadd.f32 0.0, %v285
  %v287 = vpop.f32.mrb[0].mxu0
  %v288 = vpop.f32.mrb[0].mxu0
  %v289 = vadd.f32 0.0, %v288
  %v290 = vpop.f32.mrb[0].mxu0
  %291 = vmatprep.mubr.bf16.mxu0 0
  %292 = vmatmul.mubr.bf16.gmra.mrb[0].mxu0 %v174
  %v293 = vpop.f32.mrb[0].mxu0
  %v294 = vadd.f32 0.0, %v293
  %v295 = vpop.f32.mrb[0].mxu0
  %v296 = vpop.f32.mrb[0].mxu0
  %v297 = vadd.f32 0.0, %v296
  %v298 = vpop.f32.mrb[0].mxu0
  %299 = vmatprep.mubr.bf16.mxu0 0
  %300 = vmatmul.mubr.bf16.gmra.mrb[0].mxu0 %v175
  %v301 = vpop.f32.mrb[0].mxu0
  %v302 = vadd.f32 0.0, %v301
  %v303 = vpop.f32.mrb[0].mxu0
  %v304 = vpop.f32.mrb[0].mxu0
  %v305 = vadd.f32 0.0, %v304
  %v306 = vpop.f32.mrb[0].mxu0
  %307 = vmatprep.mubr.bf16.mxu0 0
  %308 = vmatmul.mubr.bf16.gmra.mrb[0].mxu0 %v176
  %v309 = vpop.f32.mrb[0].mxu0
  %v310 = vadd.f32 0.0, %v309
  %v311 = vpop.f32.mrb[0].mxu0
  %v312 = vpop.f32.mrb[0].mxu0
  %v313 = vadd.f32 0.0, %v312
  %v314 = vpop.f32.mrb[0].mxu0
  %315 = vmatprep.mubr.bf16.mxu0 0
  %316 = vmatmul.mubr.bf16.gmra.mrb[0].mxu0 %v177
  %v317 = vpop.f32.mrb[0].mxu0
  %v318 = vadd.f32 0.0, %v317
  %v319 = vpop.f32.mrb[0].mxu0
  %v320 = vpop.f32.mrb[0].mxu0
  %v321 = vadd.f32 0.0, %v320
  %v322 = vpop.f32.mrb[0].mxu0
  %323 = vmatprep.mubr.bf16.mxu0 0
  %324 = vmatmul.mubr.bf16.gmra.mrb[0].mxu0 %v178
  %v325 = vpop.f32.mrb[0].mxu0
  %v326 = vadd.f32 0.0, %v325
  %v327 = vpop.f32.mrb[0].mxu0
  %v328 = vpop.f32.mrb[0].mxu0
  %v329 = vadd.f32 0.0, %v328
  %v330 = vpop.f32.mrb[0].mxu0
  %331 = vdwg.mxu0
  %v332 = vld [vmem:[%s2] sm:$0xff]
  %v333 = vld [vmem:[%s2 + $0x8] sm:$0xff]
  %v334 = vld [vmem:[%s2 + $0x10] sm:$0xff]
  %v335 = vld [vmem:[%s2 + $0x18] sm:$0xff]
  %v336 = vld [vmem:[%s2 + $0x20] sm:$0xff]
  %v337 = vld [vmem:[%s2 + $0x28] sm:$0xff]
  %v338 = vld [vmem:[%s2 + $0x30] sm:$0xff]
  %v339 = vld [vmem:[%s2 + $0x38] sm:$0xff]
  %v340 = vld [vmem:[%s2 + $0x40] sm:$0xff]
  %v341 = vld [vmem:[%s2 + $0x48] sm:$0xff]
  %v342 = vld [vmem:[%s2 + $0x50] sm:$0xff]
  %v343 = vld [vmem:[%s2 + $0x58] sm:$0xff]
  %v344 = vld [vmem:[%s2 + $0x60] sm:$0xff]
  %v345 = vld [vmem:[%s2 + $0x68] sm:$0xff]
  %v346 = vld [vmem:[%s2 + $0x70] sm:$0xff]
  %v347 = vld [vmem:[%s2 + $0x78] sm:$0xff]
  %v348 = vld [vmem:[%s3] sm:$0x1]
  %v350 = vlaneseq
  %v351 = vshrl.u32 %v350, 7
  %v352 = vsub.s32 0, %v351
  %v353 = vrot.slane %v348, %v352
  %355 = vmatprep.subr.mxu0 0.0
  %356 = vmatpush1.msra.mxu0 %v332
  %357 = vmatprep.subr.mxu0 0.0
  %358 = vmatpush1.msra.mxu0 %v333
  %359 = vmatprep.subr.mxu0 0.0
  %360 = vmatpush1.msra.mxu0 %v334
  %361 = vmatprep.subr.mxu0 0.0
  %362 = vmatpush1.msra.mxu0 %v335
  %363 = vmatprep.subr.mxu0 0.0
  %364 = vmatpush1.msra.mxu0 %v336
  %365 = vmatprep.subr.mxu0 0.0
  %366 = vmatpush1.msra.mxu0 %v337
  %367 = vmatprep.subr.mxu0 0.0
  %368 = vmatpush1.msra.mxu0 %v338
  %369 = vmatprep.subr.mxu0 0.0
  %370 = vmatpush1.msra.mxu0 %v339
  %371 = vmatprep.subr.mxu0 0.0
  %372 = vmatpush1.msra.mxu0 %v340
  %373 = vmatprep.subr.mxu0 0.0
  %374 = vmatpush1.msra.mxu0 %v341
  %375 = vmatprep.subr.mxu0 0.0
  %376 = vmatpush1.msra.mxu0 %v342
  %377 = vmatprep.subr.mxu0 0.0
  %378 = vmatpush1.msra.mxu0 %v343
  %379 = vmatprep.subr.mxu0 0.0
  %380 = vmatpush1.msra.mxu0 %v344
  %381 = vmatprep.subr.mxu0 0.0
  %382 = vmatpush1.msra.mxu0 %v345
  %383 = vmatprep.subr.mxu0 0.0
  %384 = vmatpush1.msra.mxu0 %v346
  %385 = vmatprep.subr.mxu0 0.0
  %386 = vmatpush1.msra.mxu0 %v347
  %387 = vmatprep.subr.mxu0 0.0
  %388 = vmatpush1.msra.mxu0 0.0
  %389 = vmatprep.subr.mxu0 0.0
  %390 = vmatpush1.msra.mxu0 0.0
  %391 = vmatprep.subr.mxu0 0.0
  %392 = vmatpush1.msra.mxu0 0.0
  %393 = vmatprep.subr.mxu0 0.0
  %394 = vmatpush1.msra.mxu0 0.0
  %395 = vmatprep.subr.mxu0 0.0
  %396 = vmatpush1.msra.mxu0 0.0
  %397 = vmatprep.subr.mxu0 0.0
  %398 = vmatpush1.msra.mxu0 0.0
  %399 = vmatprep.subr.mxu0 0.0
  %400 = vmatpush1.msra.mxu0 0.0
  %401 = vmatprep.subr.mxu0 0.0
  %402 = vmatpush1.msra.mxu0 0.0
  %403 = vmatprep.subr.mxu0 0.0
  %404 = vmatpush1.msra.mxu0 0.0
  %405 = vmatprep.subr.mxu0 0.0
  %406 = vmatpush1.msra.mxu0 0.0
  %407 = vmatprep.subr.mxu0 0.0
  %408 = vmatpush1.msra.mxu0 0.0
  %409 = vmatprep.subr.mxu0 0.0
  %410 = vmatpush1.msra.mxu0 0.0
  %411 = vmatprep.subr.mxu0 0.0
  %412 = vmatpush1.msra.mxu0 0.0
  %413 = vmatprep.subr.mxu0 0.0
  %414 = vmatpush1.msra.mxu0 0.0
  %415 = vmatprep.subr.mxu0 0.0
  %416 = vmatpush1.msra.mxu0 0.0
  %417 = vmatprep.subr.mxu0 0.0
  %418 = vmatpush1.msra.mxu0 0.0
  %419 = vmatprep.mubr.f32.mxu0 0.0
  %420 = vmatmul.mubr.f32.gmra.mrb[0].mxu0 %v270
  %v421 = vpop.f32.mrb[0].mxu0
  %v422 = vadd.f32 %v353, %v421
  %v423 = vpop.f32.mrb[0].mxu0
  %424 = vmatprep.mubr.f32.mxu0 0.0
  %425 = vmatmul.mubr.f32.gmra.mrb[0].mxu0 %v273
  %v426 = vpop.f32.mrb[0].mxu0
  %v427 = vadd.f32 %v353, %v426
  %v428 = vpop.f32.mrb[0].mxu0
  %429 = vmatprep.mubr.f32.mxu0 0.0
  %430 = vmatmul.mubr.f32.gmra.mrb[0].mxu0 %v278
  %v431 = vpop.f32.mrb[0].mxu0
  %v432 = vadd.f32 %v353, %v431
  %v433 = vpop.f32.mrb[0].mxu0
  %434 = vmatprep.mubr.f32.mxu0 0.0
  %435 = vmatmul.mubr.f32.gmra.mrb[0].mxu0 %v281
  %v436 = vpop.f32.mrb[0].mxu0
  %v437 = vadd.f32 %v353, %v436
  %v438 = vpop.f32.mrb[0].mxu0
  %439 = vmatprep.mubr.f32.mxu0 0.0
  %440 = vmatmul.mubr.f32.gmra.mrb[0].mxu0 %v286
  %v441 = vpop.f32.mrb[0].mxu0
  %v442 = vadd.f32 %v353, %v441
  %v443 = vpop.f32.mrb[0].mxu0
  %444 = vmatprep.mubr.f32.mxu0 0.0
  %445 = vmatmul.mubr.f32.gmra.mrb[0].mxu0 %v289
  %v446 = vpop.f32.mrb[0].mxu0
  %v447 = vadd.f32 %v353, %v446
  %v448 = vpop.f32.mrb[0].mxu0
  %449 = vmatprep.mubr.f32.mxu0 0.0
  %450 = vmatmul.mubr.f32.gmra.mrb[0].mxu0 %v294
  %v451 = vpop.f32.mrb[0].mxu0
  %v452 = vadd.f32 %v353, %v451
  %v453 = vpop.f32.mrb[0].mxu0
  %454 = vmatprep.mubr.f32.mxu0 0.0
  %455 = vmatmul.mubr.f32.gmra.mrb[0].mxu0 %v297
  %v456 = vpop.f32.mrb[0].mxu0
  %v457 = vadd.f32 %v353, %v456
  %v458 = vpop.f32.mrb[0].mxu0
  %459 = vmatprep.mubr.f32.mxu0 0.0
  %460 = vmatmul.mubr.f32.gmra.mrb[0].mxu0 %v302
  %v461 = vpop.f32.mrb[0].mxu0
  %v462 = vadd.f32 %v353, %v461
  %v463 = vpop.f32.mrb[0].mxu0
  %464 = vmatprep.mubr.f32.mxu0 0.0
  %465 = vmatmul.mubr.f32.gmra.mrb[0].mxu0 %v305
  %v466 = vpop.f32.mrb[0].mxu0
  %v467 = vadd.f32 %v353, %v466
  %v468 = vpop.f32.mrb[0].mxu0
  %469 = vmatprep.mubr.f32.mxu0 0.0
  %470 = vmatmul.mubr.f32.gmra.mrb[0].mxu0 %v310
  %v471 = vpop.f32.mrb[0].mxu0
  %v472 = vadd.f32 %v353, %v471
  %v473 = vpop.f32.mrb[0].mxu0
  %474 = vmatprep.mubr.f32.mxu0 0.0
  %475 = vmatmul.mubr.f32.gmra.mrb[0].mxu0 %v313
  %v476 = vpop.f32.mrb[0].mxu0
  %v477 = vadd.f32 %v353, %v476
  %v478 = vpop.f32.mrb[0].mxu0
  %479 = vmatprep.mubr.f32.mxu0 0.0
  %480 = vmatmul.mubr.f32.gmra.mrb[0].mxu0 %v318
  %v481 = vpop.f32.mrb[0].mxu0
  %v482 = vadd.f32 %v353, %v481
  %v483 = vpop.f32.mrb[0].mxu0
  %484 = vmatprep.mubr.f32.mxu0 0.0
  %485 = vmatmul.mubr.f32.gmra.mrb[0].mxu0 %v321
  %v486 = vpop.f32.mrb[0].mxu0
  %v487 = vadd.f32 %v353, %v486
  %v488 = vpop.f32.mrb[0].mxu0
  %489 = vmatprep.mubr.f32.mxu0 0.0
  %490 = vmatmul.mubr.f32.gmra.mrb[0].mxu0 %v326
  %v491 = vpop.f32.mrb[0].mxu0
  %v492 = vadd.f32 %v353, %v491
  %v493 = vpop.f32.mrb[0].mxu0
  %494 = vmatprep.mubr.f32.mxu0 0.0
  %495 = vmatmul.mubr.f32.gmra.mrb[0].mxu0 %v329
  %v496 = vpop.f32.mrb[0].mxu0
  %v497 = vadd.f32 %v353, %v496
  %v498 = vpop.f32.mrb[0].mxu0
  %499 = vdwg.mxu0
  %v500 = vld [vmem:[%s4] sm:$0x1]
  %v501 = vld [vmem:[%s5] sm:$0x1]
  %v502 = vmul.f32 %v422, %v107
  %v503 = vmul.f32 %v427, %v108
  %v504 = vmul.f32 %v432, %v109
  %v505 = vmul.f32 %v437, %v110
  %v506 = vmul.f32 %v442, %v111
  %v507 = vmul.f32 %v447, %v112
  %v508 = vmul.f32 %v452, %v113
  %v509 = vmul.f32 %v457, %v114
  %v510 = vmul.f32 %v462, %v115
  %v511 = vmul.f32 %v467, %v116
  %v512 = vmul.f32 %v472, %v117
  %v513 = vmul.f32 %v477, %v118
  %v514 = vmul.f32 %v482, %v119
  %v515 = vmul.f32 %v487, %v120
  %v516 = vmul.f32 %v492, %v121
  %v517 = vmul.f32 %v497, %v122
  %v518 = vadd.f32 %v502, %v503
  %v519 = vadd.f32 %v518, %v504
  %v520 = vadd.f32 %v519, %v505
  %v521 = vadd.f32 %v520, %v506
  %v522 = vadd.f32 %v521, %v507
  %v523 = vadd.f32 %v522, %v508
  %v524 = vadd.f32 %v523, %v509
  %v525 = vadd.f32 %v524, %v510
  %v526 = vadd.f32 %v525, %v511
  %v527 = vadd.f32 %v526, %v512
  %v528 = vadd.f32 %v527, %v513
  %v529 = vadd.f32 %v528, %v514
  %v530 = vadd.f32 %v529, %v515
  %v531 = vadd.f32 %v530, %v516
  %v532 = vadd.f32 %v531, %v517
  %v533 = vrot.slane %v532, 4
  %v534 = vadd.f32 %v532, %v533
  %v535 = vrot.slane %v534, 2
  %v536 = vadd.f32 %v534, %v535
  %v537 = vrot.slane %v536, 1
  %v538 = vadd.f32 %v536, %v537
  %v539 = vmul.f32 %v538, 0.0625
  %v540 = vsub.f32 %v422, %v539
  %v541 = vsub.f32 %v427, %v539
  %v542 = vsub.f32 %v432, %v539
  %v543 = vsub.f32 %v437, %v539
  %v544 = vsub.f32 %v442, %v539
  %v545 = vsub.f32 %v447, %v539
  %v546 = vsub.f32 %v452, %v539
  %v547 = vsub.f32 %v457, %v539
  %v548 = vsub.f32 %v462, %v539
  %v549 = vsub.f32 %v467, %v539
  %v550 = vsub.f32 %v472, %v539
  %v551 = vsub.f32 %v477, %v539
  %v552 = vsub.f32 %v482, %v539
  %v553 = vsub.f32 %v487, %v539
  %v554 = vsub.f32 %v492, %v539
  %v555 = vsub.f32 %v497, %v539
  %v556 = vmul.f32 %v540, %v107
  %v557 = vmul.f32 %v541, %v108
  %v558 = vmul.f32 %v542, %v109
  %v559 = vmul.f32 %v543, %v110
  %v560 = vmul.f32 %v544, %v111
  %v561 = vmul.f32 %v545, %v112
  %v562 = vmul.f32 %v546, %v113
  %v563 = vmul.f32 %v547, %v114
  %v564 = vmul.f32 %v548, %v115
  %v565 = vmul.f32 %v549, %v116
  %v566 = vmul.f32 %v550, %v117
  %v567 = vmul.f32 %v551, %v118
  %v568 = vmul.f32 %v552, %v119
  %v569 = vmul.f32 %v553, %v120
  %v570 = vmul.f32 %v554, %v121
  %v571 = vmul.f32 %v555, %v122
  %v572 = vmul.f32 %v556, %v556
  %v573 = vmul.f32 %v557, %v557
  %v574 = vmul.f32 %v558, %v558
  %v575 = vmul.f32 %v559, %v559
  %v576 = vmul.f32 %v560, %v560
  %v577 = vmul.f32 %v561, %v561
  %v578 = vmul.f32 %v562, %v562
  %v579 = vmul.f32 %v563, %v563
  %v580 = vmul.f32 %v564, %v564
  %v581 = vmul.f32 %v565, %v565
  %v582 = vmul.f32 %v566, %v566
  %v583 = vmul.f32 %v567, %v567
  %v584 = vmul.f32 %v568, %v568
  %v585 = vmul.f32 %v569, %v569
  %v586 = vmul.f32 %v570, %v570
  %v587 = vmul.f32 %v571, %v571
  %v588 = vadd.f32 %v572, %v573
  %v589 = vadd.f32 %v588, %v574
  %v590 = vadd.f32 %v589, %v575
  %v591 = vadd.f32 %v590, %v576
  %v592 = vadd.f32 %v591, %v577
  %v593 = vadd.f32 %v592, %v578
  %v594 = vadd.f32 %v593, %v579
  %v595 = vadd.f32 %v594, %v580
  %v596 = vadd.f32 %v595, %v581
  %v597 = vadd.f32 %v596, %v582
  %v598 = vadd.f32 %v597, %v583
  %v599 = vadd.f32 %v598, %v584
  %v600 = vadd.f32 %v599, %v585
  %v601 = vadd.f32 %v600, %v586
  %v602 = vadd.f32 %v601, %v587
  %v603 = vrot.slane %v602, 4
  %v604 = vadd.f32 %v602, %v603
  %v605 = vrot.slane %v604, 2
  %v606 = vadd.f32 %v604, %v605
  %v607 = vrot.slane %v606, 1
  %v608 = vadd.f32 %v606, %v607
  %v609 = vmul.f32 %v608, 0.0625
  %v610 = vadd.f32 %v609, 1e-05
  %v611 = vrsqrt.pop %v610
  %v612 = vmul.f32 %v500, %v611
  %v613 = vmul.f32 %v539, %v612
  %v614 = vsub.f32 %v501, %v613
  %v616 = vlaneseq
  %v617 = vshrl.u32 %v616, 7
  %v618 = vsub.s32 0, %v617
  %v619 = vrot.slane %v612, %v618
  %v621 = vmul.f32 %v422, %v619
  %v622 = vmul.f32 %v427, %v619
  %v623 = vmul.f32 %v432, %v619
  %v624 = vmul.f32 %v437, %v619
  %v625 = vmul.f32 %v442, %v619
  %v626 = vmul.f32 %v447, %v619
  %v627 = vmul.f32 %v452, %v619
  %v628 = vmul.f32 %v457, %v619
  %v629 = vmul.f32 %v462, %v619
  %v630 = vmul.f32 %v467, %v619
  %v631 = vmul.f32 %v472, %v619
  %v632 = vmul.f32 %v477, %v619
  %v633 = vmul.f32 %v482, %v619
  %v634 = vmul.f32 %v487, %v619
  %v635 = vmul.f32 %v492, %v619
  %v636 = vmul.f32 %v497, %v619
  %v638 = vlaneseq
  %v639 = vshrl.u32 %v638, 7
  %v640 = vsub.s32 0, %v639
  %v641 = vrot.slane %v614, %v640
  %v643 = vadd.f32 %v621, %v641
  %v644 = vadd.f32 %v622, %v641
  %v645 = vadd.f32 %v623, %v641
  %v646 = vadd.f32 %v624, %v641
  %v647 = vadd.f32 %v625, %v641
  %v648 = vadd.f32 %v626, %v641
  %v649 = vadd.f32 %v627, %v641
  %v650 = vadd.f32 %v628, %v641
  %v651 = vadd.f32 %v629, %v641
  %v652 = vadd.f32 %v630, %v641
  %v653 = vadd.f32 %v631, %v641
  %v654 = vadd.f32 %v632, %v641
  %v655 = vadd.f32 %v633, %v641
  %v656 = vadd.f32 %v634, %v641
  %v657 = vadd.f32 %v635, %v641
  %v658 = vadd.f32 %v636, %v641
  %v659 = vmax.f32 %v643, 0.0
  %v660 = vmax.f32 %v644, 0.0
  %v661 = vmax.f32 %v645, 0.0
  %v662 = vmax.f32 %v646, 0.0
  %v663 = vmax.f32 %v647, 0.0
  %v664 = vmax.f32 %v648, 0.0
  %v665 = vmax.f32 %v649, 0.0
  %v666 = vmax.f32 %v650, 0.0
  %v667 = vmax.f32 %v651, 0.0
  %v668 = vmax.f32 %v652, 0.0
  %v669 = vmax.f32 %v653, 0.0
  %v670 = vmax.f32 %v654, 0.0
  %v671 = vmax.f32 %v655, 0.0
  %v672 = vmax.f32 %v656, 0.0
  %v673 = vmax.f32 %v657, 0.0
  %v674 = vmax.f32 %v658, 0.0
  %v675 = vpack.c.bf16 %v660, %v659
  %v676 = vpack.c.bf16 %v662, %v661
  %v677 = vpack.c.bf16 %v664, %v663
  %v678 = vpack.c.bf16 %v666, %v665
  %v679 = vpack.c.bf16 %v668, %v667
  %v680 = vpack.c.bf16 %v670, %v669
  %v681 = vpack.c.bf16 %v672, %v671
  %v682 = vpack.c.bf16 %v674, %v673
  %683 = vmatprep.subr.bf16.mxu0 0
  %684 = vmatpush1.bf16.msra.mxu0 %v675
  %685 = vmatprep.subr.bf16.mxu0 0
  %686 = vmatpush1.bf16.msra.mxu0 %v676
  %687 = vmatprep.subr.bf16.mxu0 0
  %688 = vmatpush1.bf16.msra.mxu0 %v677
  %689 = vmatprep.subr.bf16.mxu0 0
  %690 = vmatpush1.bf16.msra.mxu0 %v678
  %691 = vmatprep.subr.bf16.mxu0 0
  %692 = vmatpush1.bf16.msra.mxu0 %v679
  %693 = vmatprep.subr.bf16.mxu0 0
  %694 = vmatpush1.bf16.msra.mxu0 %v680
  %695 = vmatprep.subr.bf16.mxu0 0
  %696 = vmatpush1.bf16.msra.mxu0 %v681
  %697 = vmatprep.subr.bf16.mxu0 0
  %698 = vmatpush1.bf16.msra.mxu0 %v682
  %699 = vmatprep.subr.bf16.mxu0 0
  %700 = vmatpush1.bf16.msra.mxu0 0
  %701 = vmatprep.subr.bf16.mxu0 0
  %702 = vmatpush1.bf16.msra.mxu0 0
  %703 = vmatprep.subr.bf16.mxu0 0
  %704 = vmatpush1.bf16.msra.mxu0 0
  %705 = vmatprep.subr.bf16.mxu0 0
  %706 = vmatpush1.bf16.msra.mxu0 0
  %707 = vmatprep.subr.bf16.mxu0 0
  %708 = vmatpush1.bf16.msra.mxu0 0
  %709 = vmatprep.subr.bf16.mxu0 0
  %710 = vmatpush1.bf16.msra.mxu0 0
  %711 = vmatprep.subr.bf16.mxu0 0
  %712 = vmatpush1.bf16.msra.mxu0 0
  %713 = vmatprep.subr.bf16.mxu0 0
  %714 = vmatpush1.bf16.msra.mxu0 0
  %715 = vmatprep.mubr.bf16.mxu0 0
  %716 = vmatmul.mubr.bf16.gmra.mrb[0].mxu0 %v171
  %v717 = vpop.f32.mrb[0].mxu0
  %v718 = vadd.f32 0.0, %v717
  %v719 = vpop.f32.mrb[0].mxu0
  %v720 = vpop.f32.mrb[0].mxu0
  %v721 = vadd.f32 0.0, %v720
  %v722 = vpop.f32.mrb[0].mxu0
  %723 = vmatprep.mubr.bf16.mxu0 0
  %724 = vmatmul.mubr.bf16.gmra.mrb[0].mxu0 %v172
  %v725 = vpop.f32.mrb[0].mxu0
  %v726 = vadd.f32 0.0, %v725
  %v727 = vpop.f32.mrb[0].mxu0
  %v728 = vpop.f32.mrb[0].mxu0
  %v729 = vadd.f32 0.0, %v728
  %v730 = vpop.f32.mrb[0].mxu0
  %731 = vmatprep.mubr.bf16.mxu0 0
  %732 = vmatmul.mubr.bf16.gmra.mrb[0].mxu0 %v173
  %v733 = vpop.f32.mrb[0].mxu0
  %v734 = vadd.f32 0.0, %v733
  %v735 = vpop.f32.mrb[0].mxu0
  %v736 = vpop.f32.mrb[0].mxu0
  %v737 = vadd.f32 0.0, %v736
  %v738 = vpop.f32.mrb[0].mxu0
  %739 = vmatprep.mubr.bf16.mxu0 0
  %740 = vmatmul.mubr.bf16.gmra.mrb[0].mxu0 %v174
  %v741 = vpop.f32.mrb[0].mxu0
  %v742 = vadd.f32 0.0, %v741
  %v743 = vpop.f32.mrb[0].mxu0
  %v744 = vpop.f32.mrb[0].mxu0
  %v745 = vadd.f32 0.0, %v744
  %v746 = vpop.f32.mrb[0].mxu0
  %747 = vmatprep.mubr.bf16.mxu0 0
  %748 = vmatmul.mubr.bf16.gmra.mrb[0].mxu0 %v175
  %v749 = vpop.f32.mrb[0].mxu0
  %v750 = vadd.f32 0.0, %v749
  %v751 = vpop.f32.mrb[0].mxu0
  %v752 = vpop.f32.mrb[0].mxu0
  %v753 = vadd.f32 0.0, %v752
  %v754 = vpop.f32.mrb[0].mxu0
  %755 = vmatprep.mubr.bf16.mxu0 0
  %756 = vmatmul.mubr.bf16.gmra.mrb[0].mxu0 %v176
  %v757 = vpop.f32.mrb[0].mxu0
  %v758 = vadd.f32 0.0, %v757
  %v759 = vpop.f32.mrb[0].mxu0
  %v760 = vpop.f32.mrb[0].mxu0
  %v761 = vadd.f32 0.0, %v760
  %v762 = vpop.f32.mrb[0].mxu0
  %763 = vmatprep.mubr.bf16.mxu0 0
  %764 = vmatmul.mubr.bf16.gmra.mrb[0].mxu0 %v177
  %v765 = vpop.f32.mrb[0].mxu0
  %v766 = vadd.f32 0.0, %v765
  %v767 = vpop.f32.mrb[0].mxu0
  %v768 = vpop.f32.mrb[0].mxu0
  %v769 = vadd.f32 0.0, %v768
  %v770 = vpop.f32.mrb[0].mxu0
  %771 = vmatprep.mubr.bf16.mxu0 0
  %772 = vmatmul.mubr.bf16.gmra.mrb[0].mxu0 %v178
  %v773 = vpop.f32.mrb[0].mxu0
  %v774 = vadd.f32 0.0, %v773
  %v775 = vpop.f32.mrb[0].mxu0
  %v776 = vpop.f32.mrb[0].mxu0
  %v777 = vadd.f32 0.0, %v776
  %v778 = vpop.f32.mrb[0].mxu0
  %779 = vdwg.mxu0
  %v780 = vld [vmem:[%s6] sm:$0xff]
  %v781 = vld [vmem:[%s6 + $0x8] sm:$0xff]
  %v782 = vld [vmem:[%s6 + $0x10] sm:$0xff]
  %v783 = vld [vmem:[%s6 + $0x18] sm:$0xff]
  %v784 = vld [vmem:[%s6 + $0x20] sm:$0xff]
  %v785 = vld [vmem:[%s6 + $0x28] sm:$0xff]
  %v786 = vld [vmem:[%s6 + $0x30] sm:$0xff]
  %v787 = vld [vmem:[%s6 + $0x38] sm:$0xff]
  %v788 = vld [vmem:[%s6 + $0x40] sm:$0xff]
  %v789 = vld [vmem:[%s6 + $0x48] sm:$0xff]
  %v790 = vld [vmem:[%s6 + $0x50] sm:$0xff]
  %v791 = vld [vmem:[%s6 + $0x58] sm:$0xff]
  %v792 = vld [vmem:[%s6 + $0x60] sm:$0xff]
  %v793 = vld [vmem:[%s6 + $0x68] sm:$0xff]
  %v794 = vld [vmem:[%s6 + $0x70] sm:$0xff]
  %v795 = vld [vmem:[%s6 + $0x78] sm:$0xff]
  %v796 = vld [vmem:[%s7] sm:$0x1]
  %v798 = vlaneseq
  %v799 = vshrl.u32 %v798, 7
  %v800 = vsub.s32 0, %v799
  %v801 = vrot.slane %v796, %v800
  %803 = vmatprep.subr.mxu0 0.0
  %804 = vmatpush1.msra.mxu0 %v780
  %805 = vmatprep.subr.mxu0 0.0
  %806 = vmatpush1.msra.mxu0 %v781
  %807 = vmatprep.subr.mxu0 0.0
  %808 = vmatpush1.msra.mxu0 %v782
  %809 = vmatprep.subr.mxu0 0.0
  %810 = vmatpush1.msra.mxu0 %v783
  %811 = vmatprep.subr.mxu0 0.0
  %812 = vmatpush1.msra.mxu0 %v784
  %813 = vmatprep.subr.mxu0 0.0
  %814 = vmatpush1.msra.mxu0 %v785
  %815 = vmatprep.subr.mxu0 0.0
  %816 = vmatpush1.msra.mxu0 %v786
  %817 = vmatprep.subr.mxu0 0.0
  %818 = vmatpush1.msra.mxu0 %v787
  %819 = vmatprep.subr.mxu0 0.0
  %820 = vmatpush1.msra.mxu0 %v788
  %821 = vmatprep.subr.mxu0 0.0
  %822 = vmatpush1.msra.mxu0 %v789
  %823 = vmatprep.subr.mxu0 0.0
  %824 = vmatpush1.msra.mxu0 %v790
  %825 = vmatprep.subr.mxu0 0.0
  %826 = vmatpush1.msra.mxu0 %v791
  %827 = vmatprep.subr.mxu0 0.0
  %828 = vmatpush1.msra.mxu0 %v792
  %829 = vmatprep.subr.mxu0 0.0
  %830 = vmatpush1.msra.mxu0 %v793
  %831 = vmatprep.subr.mxu0 0.0
  %832 = vmatpush1.msra.mxu0 %v794
  %833 = vmatprep.subr.mxu0 0.0
  %834 = vmatpush1.msra.mxu0 %v795
  %835 = vmatprep.subr.mxu0 0.0
  %836 = vmatpush1.msra.mxu0 0.0
  %837 = vmatprep.subr.mxu0 0.0
  %838 = vmatpush1.msra.mxu0 0.0
  %839 = vmatprep.subr.mxu0 0.0
  %840 = vmatpush1.msra.mxu0 0.0
  %841 = vmatprep.subr.mxu0 0.0
  %842 = vmatpush1.msra.mxu0 0.0
  %843 = vmatprep.subr.mxu0 0.0
  %844 = vmatpush1.msra.mxu0 0.0
  %845 = vmatprep.subr.mxu0 0.0
  %846 = vmatpush1.msra.mxu0 0.0
  %847 = vmatprep.subr.mxu0 0.0
  %848 = vmatpush1.msra.mxu0 0.0
  %849 = vmatprep.subr.mxu0 0.0
  %850 = vmatpush1.msra.mxu0 0.0
  %851 = vmatprep.subr.mxu0 0.0
  %852 = vmatpush1.msra.mxu0 0.0
  %853 = vmatprep.subr.mxu0 0.0
  %854 = vmatpush1.msra.mxu0 0.0
  %855 = vmatprep.subr.mxu0 0.0
  %856 = vmatpush1.msra.mxu0 0.0
  %857 = vmatprep.subr.mxu0 0.0
  %858 = vmatpush1.msra.mxu0 0.0
  %859 = vmatprep.subr.mxu0 0.0
  %860 = vmatpush1.msra.mxu0 0.0
  %861 = vmatprep.subr.mxu0 0.0
  %862 = vmatpush1.msra.mxu0 0.0
  %863 = vmatprep.subr.mxu0 0.0
  %864 = vmatpush1.msra.mxu0 0.0
  %865 = vmatprep.subr.mxu0 0.0
  %866 = vmatpush1.msra.mxu0 0.0
  %867 = vmatprep.mubr.f32.mxu0 0.0
  %868 = vmatmul.mubr.f32.gmra.mrb[0].mxu0 %v718
  %v869 = vpop.f32.mrb[0].mxu0
  %v870 = vadd.f32 %v801, %v869
  %v871 = vpop.f32.mrb[0].mxu0
  %872 = vmatprep.mubr.f32.mxu0 0.0
  %873 = vmatmul.mubr.f32.gmra.mrb[0].mxu0 %v721
  %v874 = vpop.f32.mrb[0].mxu0
  %v875 = vadd.f32 %v801, %v874
  %v876 = vpop.f32.mrb[0].mxu0
  %877 = vmatprep.mubr.f32.mxu0 0.0
  %878 = vmatmul.mubr.f32.gmra.mrb[0].mxu0 %v726
  %v879 = vpop.f32.mrb[0].mxu0
  %v880 = vadd.f32 %v801, %v879
  %v881 = vpop.f32.mrb[0].mxu0
  %882 = vmatprep.mubr.f32.mxu0 0.0
  %883 = vmatmul.mubr.f32.gmra.mrb[0].mxu0 %v729
  %v884 = vpop.f32.mrb[0].mxu0
  %v885 = vadd.f32 %v801, %v884
  %v886 = vpop.f32.mrb[0].mxu0
  %887 = vmatprep.mubr.f32.mxu0 0.0
  %888 = vmatmul.mubr.f32.gmra.mrb[0].mxu0 %v734
  %v889 = vpop.f32.mrb[0].mxu0
  %v890 = vadd.f32 %v801, %v889
  %v891 = vpop.f32.mrb[0].mxu0
  %892 = vmatprep.mubr.f32.mxu0 0.0
  %893 = vmatmul.mubr.f32.gmra.mrb[0].mxu0 %v737
  %v894 = vpop.f32.mrb[0].mxu0
  %v895 = vadd.f32 %v801, %v894
  %v896 = vpop.f32.mrb[0].mxu0
  %897 = vmatprep.mubr.f32.mxu0 0.0
  %898 = vmatmul.mubr.f32.gmra.mrb[0].mxu0 %v742
  %v899 = vpop.f32.mrb[0].mxu0
  %v900 = vadd.f32 %v801, %v899
  %v901 = vpop.f32.mrb[0].mxu0
  %902 = vmatprep.mubr.f32.mxu0 0.0
  %903 = vmatmul.mubr.f32.gmra.mrb[0].mxu0 %v745
  %v904 = vpop.f32.mrb[0].mxu0
  %v905 = vadd.f32 %v801, %v904
  %v906 = vpop.f32.mrb[0].mxu0
  %907 = vmatprep.mubr.f32.mxu0 0.0
  %908 = vmatmul.mubr.f32.gmra.mrb[0].mxu0 %v750
  %v909 = vpop.f32.mrb[0].mxu0
  %v910 = vadd.f32 %v801, %v909
  %v911 = vpop.f32.mrb[0].mxu0
  %912 = vmatprep.mubr.f32.mxu0 0.0
  %913 = vmatmul.mubr.f32.gmra.mrb[0].mxu0 %v753
  %v914 = vpop.f32.mrb[0].mxu0
  %v915 = vadd.f32 %v801, %v914
  %v916 = vpop.f32.mrb[0].mxu0
  %917 = vmatprep.mubr.f32.mxu0 0.0
  %918 = vmatmul.mubr.f32.gmra.mrb[0].mxu0 %v758
  %v919 = vpop.f32.mrb[0].mxu0
  %v920 = vadd.f32 %v801, %v919
  %v921 = vpop.f32.mrb[0].mxu0
  %922 = vmatprep.mubr.f32.mxu0 0.0
  %923 = vmatmul.mubr.f32.gmra.mrb[0].mxu0 %v761
  %v924 = vpop.f32.mrb[0].mxu0
  %v925 = vadd.f32 %v801, %v924
  %v926 = vpop.f32.mrb[0].mxu0
  %927 = vmatprep.mubr.f32.mxu0 0.0
  %928 = vmatmul.mubr.f32.gmra.mrb[0].mxu0 %v766
  %v929 = vpop.f32.mrb[0].mxu0
  %v930 = vadd.f32 %v801, %v929
  %v931 = vpop.f32.mrb[0].mxu0
  %932 = vmatprep.mubr.f32.mxu0 0.0
  %933 = vmatmul.mubr.f32.gmra.mrb[0].mxu0 %v769
  %v934 = vpop.f32.mrb[0].mxu0
  %v935 = vadd.f32 %v801, %v934
  %v936 = vpop.f32.mrb[0].mxu0
  %937 = vmatprep.mubr.f32.mxu0 0.0
  %938 = vmatmul.mubr.f32.gmra.mrb[0].mxu0 %v774
  %v939 = vpop.f32.mrb[0].mxu0
  %v940 = vadd.f32 %v801, %v939
  %v941 = vpop.f32.mrb[0].mxu0
  %942 = vmatprep.mubr.f32.mxu0 0.0
  %943 = vmatmul.mubr.f32.gmra.mrb[0].mxu0 %v777
  %v944 = vpop.f32.mrb[0].mxu0
  %v945 = vadd.f32 %v801, %v944
  %v946 = vpop.f32.mrb[0].mxu0
  %947 = vdwg.mxu0
  %v948 = vld [vmem:[%s8] sm:$0x1]
  %v949 = vld [vmem:[%s9] sm:$0x1]
  %v950 = vmul.f32 %v870, %v107
  %v951 = vmul.f32 %v875, %v108
  %v952 = vmul.f32 %v880, %v109
  %v953 = vmul.f32 %v885, %v110
  %v954 = vmul.f32 %v890, %v111
  %v955 = vmul.f32 %v895, %v112
  %v956 = vmul.f32 %v900, %v113
  %v957 = vmul.f32 %v905, %v114
  %v958 = vmul.f32 %v910, %v115
  %v959 = vmul.f32 %v915, %v116
  %v960 = vmul.f32 %v920, %v117
  %v961 = vmul.f32 %v925, %v118
  %v962 = vmul.f32 %v930, %v119
  %v963 = vmul.f32 %v935, %v120
  %v964 = vmul.f32 %v940, %v121
  %v965 = vmul.f32 %v945, %v122
  %v966 = vadd.f32 %v950, %v951
  %v967 = vadd.f32 %v966, %v952
  %v968 = vadd.f32 %v967, %v953
  %v969 = vadd.f32 %v968, %v954
  %v970 = vadd.f32 %v969, %v955
  %v971 = vadd.f32 %v970, %v956
  %v972 = vadd.f32 %v971, %v957
  %v973 = vadd.f32 %v972, %v958
  %v974 = vadd.f32 %v973, %v959
  %v975 = vadd.f32 %v974, %v960
  %v976 = vadd.f32 %v975, %v961
  %v977 = vadd.f32 %v976, %v962
  %v978 = vadd.f32 %v977, %v963
  %v979 = vadd.f32 %v978, %v964
  %v980 = vadd.f32 %v979, %v965
  %v981 = vrot.slane %v980, 4
  %v982 = vadd.f32 %v980, %v981
  %v983 = vrot.slane %v982, 2
  %v984 = vadd.f32 %v982, %v983
  %v985 = vrot.slane %v984, 1
  %v986 = vadd.f32 %v984, %v985
  %v987 = vmul.f32 %v986, 0.0625
  %v988 = vsub.f32 %v870, %v987
  %v989 = vsub.f32 %v875, %v987
  %v990 = vsub.f32 %v880, %v987
  %v991 = vsub.f32 %v885, %v987
  %v992 = vsub.f32 %v890, %v987
  %v993 = vsub.f32 %v895, %v987
  %v994 = vsub.f32 %v900, %v987
  %v995 = vsub.f32 %v905, %v987
  %v996 = vsub.f32 %v910, %v987
  %v997 = vsub.f32 %v915, %v987
  %v998 = vsub.f32 %v920, %v987
  %v999 = vsub.f32 %v925, %v987
  %v1000 = vsub.f32 %v930, %v987
  %v1001 = vsub.f32 %v935, %v987
  %v1002 = vsub.f32 %v940, %v987
  %v1003 = vsub.f32 %v945, %v987
  %v1004 = vmul.f32 %v988, %v107
  %v1005 = vmul.f32 %v989, %v108
  %v1006 = vmul.f32 %v990, %v109
  %v1007 = vmul.f32 %v991, %v110
  %v1008 = vmul.f32 %v992, %v111
  %v1009 = vmul.f32 %v993, %v112
  %v1010 = vmul.f32 %v994, %v113
  %v1011 = vmul.f32 %v995, %v114
  %v1012 = vmul.f32 %v996, %v115
  %v1013 = vmul.f32 %v997, %v116
  %v1014 = vmul.f32 %v998, %v117
  %v1015 = vmul.f32 %v999, %v118
  %v1016 = vmul.f32 %v1000, %v119
  %v1017 = vmul.f32 %v1001, %v120
  %v1018 = vmul.f32 %v1002, %v121
  %v1019 = vmul.f32 %v1003, %v122
  %v1020 = vmul.f32 %v1004, %v1004
  %v1021 = vmul.f32 %v1005, %v1005
  %v1022 = vmul.f32 %v1006, %v1006
  %v1023 = vmul.f32 %v1007, %v1007
  %v1024 = vmul.f32 %v1008, %v1008
  %v1025 = vmul.f32 %v1009, %v1009
  %v1026 = vmul.f32 %v1010, %v1010
  %v1027 = vmul.f32 %v1011, %v1011
  %v1028 = vmul.f32 %v1012, %v1012
  %v1029 = vmul.f32 %v1013, %v1013
  %v1030 = vmul.f32 %v1014, %v1014
  %v1031 = vmul.f32 %v1015, %v1015
  %v1032 = vmul.f32 %v1016, %v1016
  %v1033 = vmul.f32 %v1017, %v1017
  %v1034 = vmul.f32 %v1018, %v1018
  %v1035 = vmul.f32 %v1019, %v1019
  %v1036 = vadd.f32 %v1020, %v1021
  %v1037 = vadd.f32 %v1036, %v1022
  %v1038 = vadd.f32 %v1037, %v1023
  %v1039 = vadd.f32 %v1038, %v1024
  %v1040 = vadd.f32 %v1039, %v1025
  %v1041 = vadd.f32 %v1040, %v1026
  %v1042 = vadd.f32 %v1041, %v1027
  %v1043 = vadd.f32 %v1042, %v1028
  %v1044 = vadd.f32 %v1043, %v1029
  %v1045 = vadd.f32 %v1044, %v1030
  %v1046 = vadd.f32 %v1045, %v1031
  %v1047 = vadd.f32 %v1046, %v1032
  %v1048 = vadd.f32 %v1047, %v1033
  %v1049 = vadd.f32 %v1048, %v1034
  %v1050 = vadd.f32 %v1049, %v1035
  %v1051 = vrot.slane %v1050, 4
  %v1052 = vadd.f32 %v1050, %v1051
  %v1053 = vrot.slane %v1052, 2
  %v1054 = vadd.f32 %v1052, %v1053
  %v1055 = vrot.slane %v1054, 1
  %v1056 = vadd.f32 %v1054, %v1055
  %v1057 = vmul.f32 %v1056, 0.0625
  %v1058 = vadd.f32 %v1057, 1e-05
  %v1059 = vrsqrt.pop %v1058
  %v1060 = vmul.f32 %v948, %v1059
  %v1061 = vmul.f32 %v987, %v1060
  %v1062 = vsub.f32 %v949, %v1061
  %v1064 = vlaneseq
  %v1065 = vshrl.u32 %v1064, 7
  %v1066 = vsub.s32 0, %v1065
  %v1067 = vrot.slane %v1060, %v1066
  %v1069 = vmul.f32 %v870, %v1067
  %v1070 = vmul.f32 %v875, %v1067
  %v1071 = vmul.f32 %v880, %v1067
  %v1072 = vmul.f32 %v885, %v1067
  %v1073 = vmul.f32 %v890, %v1067
  %v1074 = vmul.f32 %v895, %v1067
  %v1075 = vmul.f32 %v900, %v1067
  %v1076 = vmul.f32 %v905, %v1067
  %v1077 = vmul.f32 %v910, %v1067
  %v1078 = vmul.f32 %v915, %v1067
  %v1079 = vmul.f32 %v920, %v1067
  %v1080 = vmul.f32 %v925, %v1067
  %v1081 = vmul.f32 %v930, %v1067
  %v1082 = vmul.f32 %v935, %v1067
  %v1083 = vmul.f32 %v940, %v1067
  %v1084 = vmul.f32 %v945, %v1067
  %v1086 = vlaneseq
  %v1087 = vshrl.u32 %v1086, 7
  %v1088 = vsub.s32 0, %v1087
  %v1089 = vrot.slane %v1062, %v1088
  %v1091 = vadd.f32 %v1069, %v1089
  %v1092 = vadd.f32 %v1070, %v1089
  %v1093 = vadd.f32 %v1071, %v1089
  %v1094 = vadd.f32 %v1072, %v1089
  %v1095 = vadd.f32 %v1073, %v1089
  %v1096 = vadd.f32 %v1074, %v1089
  %v1097 = vadd.f32 %v1075, %v1089
  %v1098 = vadd.f32 %v1076, %v1089
  %v1099 = vadd.f32 %v1077, %v1089
  %v1100 = vadd.f32 %v1078, %v1089
  %v1101 = vadd.f32 %v1079, %v1089
  %v1102 = vadd.f32 %v1080, %v1089
  %v1103 = vadd.f32 %v1081, %v1089
  %v1104 = vadd.f32 %v1082, %v1089
  %v1105 = vadd.f32 %v1083, %v1089
  %v1106 = vadd.f32 %v1084, %v1089
  %v1107 = vmax.f32 %v1091, 0.0
  %v1108 = vmax.f32 %v1092, 0.0
  %v1109 = vmax.f32 %v1093, 0.0
  %v1110 = vmax.f32 %v1094, 0.0
  %v1111 = vmax.f32 %v1095, 0.0
  %v1112 = vmax.f32 %v1096, 0.0
  %v1113 = vmax.f32 %v1097, 0.0
  %v1114 = vmax.f32 %v1098, 0.0
  %v1115 = vmax.f32 %v1099, 0.0
  %v1116 = vmax.f32 %v1100, 0.0
  %v1117 = vmax.f32 %v1101, 0.0
  %v1118 = vmax.f32 %v1102, 0.0
  %v1119 = vmax.f32 %v1103, 0.0
  %v1120 = vmax.f32 %v1104, 0.0
  %v1121 = vmax.f32 %v1105, 0.0
  %v1122 = vmax.f32 %v1106, 0.0
  %v1123 = vld [vmem:[%s10] sm:$0xff]
  %v1124 = vld [vmem:[%s10 + $0x8] sm:$0xff]
  %v1125 = vld [vmem:[%s10 + $0x10] sm:$0xff]
  %v1126 = vld [vmem:[%s10 + $0x18] sm:$0xff]
  %v1127 = vld [vmem:[%s10 + $0x20] sm:$0xff]
  %v1128 = vld [vmem:[%s10 + $0x28] sm:$0xff]
  %v1129 = vld [vmem:[%s10 + $0x30] sm:$0xff]
  %v1130 = vld [vmem:[%s10 + $0x38] sm:$0xff]
  %v1131 = vld [vmem:[%s10 + $0x40] sm:$0xff]
  %v1132 = vld [vmem:[%s10 + $0x48] sm:$0xff]
  %v1133 = vld [vmem:[%s10 + $0x50] sm:$0xff]
  %v1134 = vld [vmem:[%s10 + $0x58] sm:$0xff]
  %v1135 = vld [vmem:[%s10 + $0x60] sm:$0xff]
  %v1136 = vld [vmem:[%s10 + $0x68] sm:$0xff]
  %v1137 = vld [vmem:[%s10 + $0x70] sm:$0xff]
  %v1138 = vld [vmem:[%s10 + $0x78] sm:$0xff]
  %v1139 = vld [vmem:[%s11] sm:$0x1]
  %v1141 = vlaneseq
  %v1142 = vshrl.u32 %v1141, 7
  %v1143 = vsub.s32 0, %v1142
  %v1144 = vrot.slane %v1139, %v1143
  %1146 = vmatprep.subr.mxu0 0.0
  %1147 = vmatpush1.msra.mxu0 %v1123
  %1148 = vmatprep.subr.mxu0 0.0
  %1149 = vmatpush1.msra.mxu0 %v1124
  %1150 = vmatprep.subr.mxu0 0.0
  %1151 = vmatpush1.msra.mxu0 %v1125
  %1152 = vmatprep.subr.mxu0 0.0
  %1153 = vmatpush1.msra.mxu0 %v1126
  %1154 = vmatprep.subr.mxu0 0.0
  %1155 = vmatpush1.msra.mxu0 %v1127
  %1156 = vmatprep.subr.mxu0 0.0
  %1157 = vmatpush1.msra.mxu0 %v1128
  %1158 = vmatprep.subr.mxu0 0.0
  %1159 = vmatpush1.msra.mxu0 %v1129
  %1160 = vmatprep.subr.mxu0 0.0
  %1161 = vmatpush1.msra.mxu0 %v1130
  %1162 = vmatprep.subr.mxu0 0.0
  %1163 = vmatpush1.msra.mxu0 %v1131
  %1164 = vmatprep.subr.mxu0 0.0
  %1165 = vmatpush1.msra.mxu0 %v1132
  %1166 = vmatprep.subr.mxu0 0.0
  %1167 = vmatpush1.msra.mxu0 %v1133
  %1168 = vmatprep.subr.mxu0 0.0
  %1169 = vmatpush1.msra.mxu0 %v1134
  %1170 = vmatprep.subr.mxu0 0.0
  %1171 = vmatpush1.msra.mxu0 %v1135
  %1172 = vmatprep.subr.mxu0 0.0
  %1173 = vmatpush1.msra.mxu0 %v1136
  %1174 = vmatprep.subr.mxu0 0.0
  %1175 = vmatpush1.msra.mxu0 %v1137
  %1176 = vmatprep.subr.mxu0 0.0
  %1177 = vmatpush1.msra.mxu0 %v1138
  %1178 = vmatprep.subr.mxu0 0.0
  %1179 = vmatpush1.msra.mxu0 0.0
  %1180 = vmatprep.subr.mxu0 0.0
  %1181 = vmatpush1.msra.mxu0 0.0
  %1182 = vmatprep.subr.mxu0 0.0
  %1183 = vmatpush1.msra.mxu0 0.0
  %1184 = vmatprep.subr.mxu0 0.0
  %1185 = vmatpush1.msra.mxu0 0.0
  %1186 = vmatprep.subr.mxu0 0.0
  %1187 = vmatpush1.msra.mxu0 0.0
  %1188 = vmatprep.subr.mxu0 0.0
  %1189 = vmatpush1.msra.mxu0 0.0
  %1190 = vmatprep.subr.mxu0 0.0
  %1191 = vmatpush1.msra.mxu0 0.0
  %1192 = vmatprep.subr.mxu0 0.0
  %1193 = vmatpush1.msra.mxu0 0.0
  %1194 = vmatprep.subr.mxu0 0.0
  %1195 = vmatpush1.msra.mxu0 0.0
  %1196 = vmatprep.subr.mxu0 0.0
  %1197 = vmatpush1.msra.mxu0 0.0
  %1198 = vmatprep.subr.mxu0 0.0
  %1199 = vmatpush1.msra.mxu0 0.0
  %1200 = vmatprep.subr.mxu0 0.0
  %1201 = vmatpush1.msra.mxu0 0.0
  %1202 = vmatprep.subr.mxu0 0.0
  %1203 = vmatpush1.msra.mxu0 0.0
  %1204 = vmatprep.subr.mxu0 0.0
  %1205 = vmatpush1.msra.mxu0 0.0
  %1206 = vmatprep.subr.mxu0 0.0
  %1207 = vmatpush1.msra.mxu0 0.0
  %1208 = vmatprep.subr.mxu0 0.0
  %1209 = vmatpush1.msra.mxu0 0.0
  %1210 = vmatprep.mubr.f32.mxu0 0.0
  %1211 = vmatmul.mubr.f32.gmra.mrb[0].mxu0 %v1107
  %v1212 = vpop.f32.mrb[0].mxu0
  %v1213 = vadd.f32 %v1144, %v1212
  %v1214 = vpop.f32.mrb[0].mxu0
  %1215 = vmatprep.mubr.f32.mxu0 0.0
  %1216 = vmatmul.mubr.f32.gmra.mrb[0].mxu0 %v1108
  %v1217 = vpop.f32.mrb[0].mxu0
  %v1218 = vadd.f32 %v1144, %v1217
  %v1219 = vpop.f32.mrb[0].mxu0
  %1220 = vmatprep.mubr.f32.mxu0 0.0
  %1221 = vmatmul.mubr.f32.gmra.mrb[0].mxu0 %v1109
  %v1222 = vpop.f32.mrb[0].mxu0
  %v1223 = vadd.f32 %v1144, %v1222
  %v1224 = vpop.f32.mrb[0].mxu0
  %1225 = vmatprep.mubr.f32.mxu0 0.0
  %1226 = vmatmul.mubr.f32.gmra.mrb[0].mxu0 %v1110
  %v1227 = vpop.f32.mrb[0].mxu0
  %v1228 = vadd.f32 %v1144, %v1227
  %v1229 = vpop.f32.mrb[0].mxu0
  %1230 = vmatprep.mubr.f32.mxu0 0.0
  %1231 = vmatmul.mubr.f32.gmra.mrb[0].mxu0 %v1111
  %v1232 = vpop.f32.mrb[0].mxu0
  %v1233 = vadd.f32 %v1144, %v1232
  %v1234 = vpop.f32.mrb[0].mxu0
  %1235 = vmatprep.mubr.f32.mxu0 0.0
  %1236 = vmatmul.mubr.f32.gmra.mrb[0].mxu0 %v1112
  %v1237 = vpop.f32.mrb[0].mxu0
  %v1238 = vadd.f32 %v1144, %v1237
  %v1239 = vpop.f32.mrb[0].mxu0
  %1240 = vmatprep.mubr.f32.mxu0 0.0
  %1241 = vmatmul.mubr.f32.gmra.mrb[0].mxu0 %v1113
  %v1242 = vpop.f32.mrb[0].mxu0
  %v1243 = vadd.f32 %v1144, %v1242
  %v1244 = vpop.f32.mrb[0].mxu0
  %1245 = vmatprep.mubr.f32.mxu0 0.0
  %1246 = vmatmul.mubr.f32.gmra.mrb[0].mxu0 %v1114
  %v1247 = vpop.f32.mrb[0].mxu0
  %v1248 = vadd.f32 %v1144, %v1247
  %v1249 = vpop.f32.mrb[0].mxu0
  %1250 = vmatprep.mubr.f32.mxu0 0.0
  %1251 = vmatmul.mubr.f32.gmra.mrb[0].mxu0 %v1115
  %v1252 = vpop.f32.mrb[0].mxu0
  %v1253 = vadd.f32 %v1144, %v1252
  %v1254 = vpop.f32.mrb[0].mxu0
  %1255 = vmatprep.mubr.f32.mxu0 0.0
  %1256 = vmatmul.mubr.f32.gmra.mrb[0].mxu0 %v1116
  %v1257 = vpop.f32.mrb[0].mxu0
  %v1258 = vadd.f32 %v1144, %v1257
  %v1259 = vpop.f32.mrb[0].mxu0
  %1260 = vmatprep.mubr.f32.mxu0 0.0
  %1261 = vmatmul.mubr.f32.gmra.mrb[0].mxu0 %v1117
  %v1262 = vpop.f32.mrb[0].mxu0
  %v1263 = vadd.f32 %v1144, %v1262
  %v1264 = vpop.f32.mrb[0].mxu0
  %1265 = vmatprep.mubr.f32.mxu0 0.0
  %1266 = vmatmul.mubr.f32.gmra.mrb[0].mxu0 %v1118
  %v1267 = vpop.f32.mrb[0].mxu0
  %v1268 = vadd.f32 %v1144, %v1267
  %v1269 = vpop.f32.mrb[0].mxu0
  %1270 = vmatprep.mubr.f32.mxu0 0.0
  %1271 = vmatmul.mubr.f32.gmra.mrb[0].mxu0 %v1119
  %v1272 = vpop.f32.mrb[0].mxu0
  %v1273 = vadd.f32 %v1144, %v1272
  %v1274 = vpop.f32.mrb[0].mxu0
  %1275 = vmatprep.mubr.f32.mxu0 0.0
  %1276 = vmatmul.mubr.f32.gmra.mrb[0].mxu0 %v1120
  %v1277 = vpop.f32.mrb[0].mxu0
  %v1278 = vadd.f32 %v1144, %v1277
  %v1279 = vpop.f32.mrb[0].mxu0
  %1280 = vmatprep.mubr.f32.mxu0 0.0
  %1281 = vmatmul.mubr.f32.gmra.mrb[0].mxu0 %v1121
  %v1282 = vpop.f32.mrb[0].mxu0
  %v1283 = vadd.f32 %v1144, %v1282
  %v1284 = vpop.f32.mrb[0].mxu0
  %1285 = vmatprep.mubr.f32.mxu0 0.0
  %1286 = vmatmul.mubr.f32.gmra.mrb[0].mxu0 %v1122
  %v1287 = vpop.f32.mrb[0].mxu0
  %v1288 = vadd.f32 %v1144, %v1287
  %v1289 = vpop.f32.mrb[0].mxu0
  %1290 = vdwg.mxu0
  %1291 = vst [vmem:[%s12] sm:$0xff] %v1213
  %1292 = vst [vmem:[%s12 + $0x8] sm:$0xff] %v1218
  %1293 = vst [vmem:[%s12 + $0x10] sm:$0xff] %v1223
  %1294 = vst [vmem:[%s12 + $0x18] sm:$0xff] %v1228
  %1295 = vst [vmem:[%s12 + $0x20] sm:$0xff] %v1233
  %1296 = vst [vmem:[%s12 + $0x28] sm:$0xff] %v1238
  %1297 = vst [vmem:[%s12 + $0x30] sm:$0xff] %v1243
  %1298 = vst [vmem:[%s12 + $0x38] sm:$0xff] %v1248
  %1299 = vst [vmem:[%s12 + $0x40] sm:$0xff] %v1253
  %1300 = vst [vmem:[%s12 + $0x48] sm:$0xff] %v1258
  %1301 = vst [vmem:[%s12 + $0x50] sm:$0xff] %v1263
  %1302 = vst [vmem:[%s12 + $0x58] sm:$0xff] %v1268
  %1303 = vst [vmem:[%s12 + $0x60] sm:$0xff] %v1273
  %1304 = vst [vmem:[%s12 + $0x68] sm:$0xff] %v1278
  %1305 = vst [vmem:[%s12 + $0x70] sm:$0xff] %v1283
  %1306 = vst [vmem:[%s12 + $0x78] sm:$0xff] %v1288
  // Predicated region
  $region50: #{gnn_forward.1} parent=0 // pred_check
    _
  $region51: #{gnn_forward.1} parent=0 // pred_check_branch
    %1308 = sbr.rel (0) target = $region53
  $region52: #{gnn_forward.1} parent=0 // pred_region
    _
  $region53: #{gnn_forward.1} parent=0 // pred_fallthru
    _
  // Predicated region
  $region54: #{gnn_forward.1} parent=0 // pred_check
    _
  $region55: #{gnn_forward.1} parent=0 // pred_check_branch
    %1310 = sbr.rel (0) target = $region57
  $region56: #{gnn_forward.1} parent=0 // pred_region
    _
  $region57: #{gnn_forward.1} parent=0 // pred_fallthru
    _

</llo_original>
